<compile_context>
chip_gen: v6e
topology: v6e:2x2x1
jax: 0.10.0
libtpu: 0.0.40
codegen_flags: <defaults>
</compile_context>

<pallas_src>
import numpy as np
import jax
import jax.numpy as jnp
from jax import lax
from jax.experimental import pallas as pl
from jax.experimental.pallas import tpu as pltpu

# ----- stand-ins for the `args.*` hyperparameters -----
CFG_FC = (32, 32, 32)          # cfg_fc
IN_SIZE = 8                    # args.in_size  (== stride)
OUT_SIZE = 10                  # args.out_size
T_TOTAL = 784                  # psMNIST pixel count (hardcoded in the module)
STRIDE = IN_SIZE
T = T_TOTAL // STRIDE          # 98 time steps
CYCLE_MIN = (4, 4, 4)
CYCLE_MAX = (8, 8, 8)
DC_MIN = (0.1, 0.1, 0.1)
DC_MAX = (0.9, 0.9, 0.9)
PHASE_MAX = (0.5, 0.5, 0.5)
NOISE_STD = 0.01
B_J0 = 0.01
BETA = 1.8                     # isAdapt=1
H1, H2, H3 = CFG_FC

UNROLL = 2                     # manual time-loop unroll factor
assert T % UNROLL == 0
assert STRIDE == IN_SIZE       # window construction below relies on this

# packed per-step lane layout: [ xin | n1a | n1b | n2a | n2b | n3 ]
OFF_XIN = 0
OFF_N1A = OFF_XIN + H1
OFF_N1B = OFF_N1A + H1
OFF_N2A = OFF_N1B + H1
OFF_N2B = OFF_N2A + H2
OFF_N3 = OFF_N2B + H2
PACK_W = OFF_N3 + H3           # 192
MASK_W = H1 + H2 + H3          # 96


def _round_up(a, b):
    return -(-a // b) * b


# ---------------------------------------------------------------------------
# mask construction (faithful numpy port of create_general_mask)
# ---------------------------------------------------------------------------
def create_general_mask(dim, c_min, c_max, min_dc, max_dc, phase_shift_max, T):
    mask = []
    dc_steps = np.linspace(min_dc, max_dc, dim)
    cycles = np.linspace(c_min, c_max, dim)
    phase_shifts = np.linspace(0, int(phase_shift_max * c_max), dim)
    for cycle, dc, phase_shift in zip(cycles, dc_steps, phase_shifts):
        cycle = int(np.round(cycle))
        on_length = int(np.round(dc * cycle))
        off_length = cycle - on_length
        pattern = [1] * on_length + [0] * off_length
        phase_shift = int(np.round(phase_shift))
        pattern = pattern[-phase_shift:] + pattern[:-phase_shift]
        full_pattern = pattern * (T // cycle) + pattern[: T % cycle]
        mask.append(full_pattern)
    return np.asarray(mask, dtype=np.float32)          # [dim, T]


def build_masks_packed():
    parts = []
    for i, dim in enumerate(CFG_FC):
        m = create_general_mask(dim, CYCLE_MIN[i], CYCLE_MAX[i],
                                DC_MIN[i], DC_MAX[i], PHASE_MAX[i], T)  # [dim, T]
        parts.append(m.T)                                               # [T, dim]
    packed = np.concatenate(parts, axis=1)                              # [T, 96]
    return jnp.asarray(packed.reshape(T, 1, MASK_W))


# ---------------------------------------------------------------------------
# in-kernel neuron update (mem_update_adp_skip, dt=1, R_m=1, isAdapt=1)
# ---------------------------------------------------------------------------
def _mem_update(inp, mem, spike, alpha, om_alpha, ro, om_ro, b, mask):
    pre_mem = mem
    b = ro * b + om_ro * spike
    Bth = B_J0 + BETA * b
    mem = mem * alpha + om_alpha * inp - Bth * spike
    mem = jnp.where(mask == 0.0, pre_mem, mem)
    spike_new = (mem - Bth > 0.0).astype(jnp.float32) * mask   # ActFun_adp forward
    return mem, spike_new, b


# ---------------------------------------------------------------------------
# Pallas kernel: the whole time recurrence for one batch tile
# ---------------------------------------------------------------------------
def _rhy_asrnn_kernel(
    data_ref,                        # [T, bt, PACK_W]  packed xin|n1a|n1b|n2a|n2b|n3
    mask_ref,                        # [T, 1, MASK_W]   packed rhythm masks m1|m2|m3
    wh1_ref,                         # [H1, H1]         bf16
    w2_ref,                          # [H1+H2, H2]      bf16 (i2h_2 ; h2h_2 stacked)
    wi3_ref,                         # [H2, H3]         bf16
    wo_ref,                          # [H3, OUT]        f32 (used once at finalize)
    b2_ref, bi3_ref, bo_ref,         # [1, H2], [1, H3], [1, OUT]
    a1_ref, r1_ref, a2_ref, r2_ref, a3_ref, r3_ref,   # [1, H*] decays
    out_ref, s1_ref, s2_ref, s3_ref,
):
    steps = data_ref.shape[0]
    n = data_ref.shape[1]

    # ---- loop-invariant loads; constants stay as [1,H] rows (implicit bcast) ----
    wh1 = wh1_ref[...]
    w2 = w2_ref[...]
    wi3 = wi3_ref[...]
    bias2 = b2_ref[...]
    bias3 = bi3_ref[...]
    a1 = a1_ref[...]; oa1 = 1.0 - a1
    r1 = r1_ref[...]; or1 = 1.0 - r1
    a2 = a2_ref[...]; oa2 = 1.0 - a2
    r2 = r2_ref[...]; or2 = 1.0 - r2
    a3 = a3_ref[...]; oa3 = 1.0 - a3
    r3 = r3_ref[...]; or3 = 1.0 - r3

    z1 = jnp.zeros((n, H1), jnp.float32)
    z2 = jnp.zeros((n, H2), jnp.float32)
    z3 = jnp.zeros((n, H3), jnp.float32)
    carry0 = (
        z1, z1, jnp.full((n, H1), B_J0, jnp.float32),    # mem1, spk1, b1
        z2, z2, jnp.full((n, H2), B_J0, jnp.float32),    # mem2, spk2, b2
        z3, z3, jnp.full((n, H3), B_J0, jnp.float32),    # mem3, spk3, b3
        z1, z2, z3,                                      # clean spike sums
        z3,                                              # noisy spk3 sum (readout hoist)
    )

    def one_step(t, c):
        (mem1, spk1, b1, mem2, spk2, b2, mem3, spk3, b3, s1, s2, s3, oacc) = c

        row = data_ref[t]                                # (n, PACK_W)
        xin = row[:, OFF_XIN:OFF_N1A]
        n1a = row[:, OFF_N1A:OFF_N1B]
        n1b = row[:, OFF_N1B:OFF_N2A]
        n2a = row[:, OFF_N2A:OFF_N2B]
        n2b = row[:, OFF_N2B:OFF_N3]
        nz3 = row[:, OFF_N3:PACK_W]
        mrow = mask_ref[t]                               # (1, MASK_W)
        m1 = mrow[:, 0:H1]
        m2 = mrow[:, H1:H1 + H2]
        m3 = mrow[:, H1 + H2:MASK_W]

        # ---- layer 1 (input drive precomputed outside the loop) ----
        spk1_in = spk1 * n1a                             # add_noise(h2h1_spike)
        h1_in = xin + jnp.dot(spk1_in.astype(jnp.bfloat16), wh1,
                              preferred_element_type=jnp.float32)
        mem1, ns1, b1 = _mem_update(h1_in, mem1, spk1_in, a1, oa1, r1, or1, b1, m1)
        s1 = s1 + ns1
        spk1 = ns1 * n1b                                 # add_noise, carried as state

        # ---- layer 2 (i2h_2 + h2h_2 fused into a single dot) ----
        spk2_in = spk2 * n2a                             # add_noise(h2h2_spike)
        cat = jnp.concatenate([spk1, spk2_in], axis=-1).astype(jnp.bfloat16)
        h2_in = jnp.dot(cat, w2, preferred_element_type=jnp.float32) + bias2
        mem2, ns2, b2 = _mem_update(h2_in, mem2, spk2_in, a2, oa2, r2, or2, b2, m2)
        s2 = s2 + ns2
        spk2 = ns2 * n2b                                 # add_noise, carried as state

        # ---- layer 3 (no recurrent weight, no pre-update noise) ----
        h3_in = jnp.dot(spk2.astype(jnp.bfloat16), wi3,
                        preferred_element_type=jnp.float32) + bias3
        mem3, ns3, b3 = _mem_update(h3_in, mem3, spk3, a3, oa3, r3, or3, b3, m3)
        s3 = s3 + ns3
        spk3 = ns3 * nz3                                 # add_noise, carried as state

        # readout is linear -> only accumulate the noisy spikes here
        oacc = oacc + spk3
        return (mem1, spk1, b1, mem2, spk2, b2, mem3, spk3, b3, s1, s2, s3, oacc)

    def unrolled(i, c):
        t0 = i * UNROLL
        for u in range(UNROLL):                          # manual 2x unroll
            c = one_step(t0 + u, c)
        return c

    final = lax.fori_loop(0, steps // UNROLL, unrolled, carry0)
    s1, s2, s3, oacc = final[9], final[10], final[11], final[12]

    # hoisted readout: one matmul + T * bias instead of 98 per-step matmuls
    out_ref[...] = (jnp.dot(oacc, wo_ref[...], preferred_element_type=jnp.float32)
                    + float(steps) * bo_ref[...])
    s1_ref[...] = s1
    s2_ref[...] = s2
    s3_ref[...] = s3


# ---------------------------------------------------------------------------
# parameter initialization (deterministic, mirrors _initial_parameters shapes)
# ---------------------------------------------------------------------------
def build_params(key):
    ks = jax.random.split(key, 12)

    def xavier(k, out_f, in_f):
        lim = float(np.sqrt(6.0 / (in_f + out_f)))
        return jax.random.uniform(k, (out_f, in_f), jnp.float32, -lim, lim)

    wi1 = xavier(ks[0], H1, IN_SIZE)
    wi2 = xavier(ks[1], H2, H1)
    wi3 = xavier(ks[2], H3, H2)
    wo = xavier(ks[3], OUT_SIZE, H3)
    wh1 = jax.random.orthogonal(ks[4], H1).astype(jnp.float32)
    wh2 = jax.random.orthogonal(ks[5], H2).astype(jnp.float32)

    tau_m1 = 5.0 + 1.0 * jax.random.normal(ks[6], (H1,), jnp.float32)
    tau_m2 = 5.0 + 1.0 * jax.random.normal(ks[7], (H2,), jnp.float32)
    tau_m3 = 5.0 + 1.0 * jax.random.normal(ks[8], (H3,), jnp.float32)
    tau_a1 = 700.0 + 25.0 * jax.random.normal(ks[9], (H1,), jnp.float32)
    tau_a2 = 700.0 + 25.0 * jax.random.normal(ks[10], (H2,), jnp.float32)
    tau_a3 = 700.0 + 25.0 * jax.random.normal(ks[11], (H3,), jnp.float32)

    # h2o_3 bias keeps nn.Linear default init (it is not reset in the module)
    kb = jax.random.fold_in(key, 99)
    bo = jax.random.uniform(kb, (OUT_SIZE,), jnp.float32,
                            -1.0 / np.sqrt(H3), 1.0 / np.sqrt(H3))

    p = dict(
        wi1=wi1.T,                                   # [IN, H1]  (hoisted input projection)
        b1=jnp.zeros((1, H1), jnp.float32),          # bi1 + bh1 (both zero)
        wh1=wh1.T,                                   # [H1, H1]
        wi2=wi2.T,                                   # [H1, H2]
        b2=jnp.zeros((1, H2), jnp.float32),          # bi2 + bh2 (both zero)
        wh2=wh2.T,                                   # [H2, H2]
        wi3=wi3.T, bi3=jnp.zeros((1, H3), jnp.float32),
        wo=wo.T, bo=bo.reshape(1, OUT_SIZE),
        a1=jnp.exp(-1.0 / tau_m1).reshape(1, H1), r1=jnp.exp(-1.0 / tau_a1).reshape(1, H1),
        a2=jnp.exp(-1.0 / tau_m2).reshape(1, H2), r2=jnp.exp(-1.0 / tau_a2).reshape(1, H2),
        a3=jnp.exp(-1.0 / tau_m3).reshape(1, H3), r3=jnp.exp(-1.0 / tau_a3).reshape(1, H3),
    )
    return p


# ---------------------------------------------------------------------------
# wrapper: window construction, noise pre-draw + lane packing, layer-1 input
# projection hoist, batch-tiled grid over a single pallas_call
# ---------------------------------------------------------------------------
def rhy_asrnn_forward(x, params, masks_packed, noise_key):
    N = x.shape[0]
    bt = min(32, _round_up(N, 8))                        # batch tile (sublane-aligned)
    n_pad = _round_up(N, bt)
    x_flat = jnp.reshape(x, (N, -1)).astype(jnp.float32)                 # [N, 784]
    x_flat = jnp.pad(x_flat, ((0, n_pad - N), (0, 0)))                   # [Np, 784]

    # per-step input windows (faithful to the module's `start_idx < self.T - in_size`
    # condition with self.T == 98: the first 12 steps use their stride window, the
    # remaining 86 all reuse the final IN_SIZE pixels)
    n_own = max(0, min(T, -(-(T - IN_SIZE) // STRIDE)))
    own = x_flat[:, : n_own * STRIDE].reshape(n_pad, n_own, IN_SIZE)
    own = jnp.transpose(own, (1, 0, 2))                                  # [n_own, Np, IN]
    tail = jnp.broadcast_to(x_flat[None, :, T_TOTAL - IN_SIZE:],
                            (T - n_own, n_pad, IN_SIZE))
    x_steps = jnp.concatenate([own, tail], axis=0)                       # [T, Np, IN]

    # add_noise multipliers (1 + std * N(0,1)), pre-drawn deterministically
    # TODO(synk): generate these on-chip with pltpu.prng_seed/prng_random_bits to
    # remove the noise HBM traffic entirely.
    ks = jax.random.split(noise_key, 6)
    mk = lambda k, s: 1.0 + NOISE_STD * jax.random.normal(k, s, jnp.float32)
    nx = mk(ks[0], (T, n_pad, IN_SIZE))
    n1a = mk(ks[1], (T, n_pad, H1))
    n1b = mk(ks[2], (T, n_pad, H1))
    n2a = mk(ks[3], (T, n_pad, H2))
    n2b = mk(ks[4], (T, n_pad, H2))
    n3 = mk(ks[5], (T, n_pad, H3))

    # layer-1 input drive is independent of the recurrence -> one batched matmul
    # outside the sequential loop:  i2h_1(add_noise(x_t)) + (bi1 + bh1)
    xin_all = jnp.einsum("tni,ih->tnh", x_steps * nx, params["wi1"]) + params["b1"]

    # single lane-packed per-step tensor (cuts lane-padding waste in DMA/VMEM)
    packed = jnp.concatenate([xin_all, n1a, n1b, n2a, n2b, n3], axis=-1)  # [T, Np, 192]

    # bf16 copies of the in-loop matmul weights (f32 accumulation in-kernel)
    wh1_b = params["wh1"].astype(jnp.bfloat16)
    w2_b = jnp.concatenate([params["wi2"], params["wh2"]], axis=0).astype(jnp.bfloat16)
    wi3_b = params["wi3"].astype(jnp.bfloat16)

    def _const_spec(shape):
        zeros = (0,) * len(shape)
        return pl.BlockSpec(shape, lambda i: zeros)

    grid = (n_pad // bt,)
    in_specs = [
        pl.BlockSpec((T, bt, PACK_W), lambda i: (0, i, 0)),
        _const_spec((T, 1, MASK_W)),
        _const_spec((H1, H1)),
        _const_spec((H1 + H2, H2)),
        _const_spec((H2, H3)),
        _const_spec((H3, OUT_SIZE)),
        _const_spec((1, H2)),
        _const_spec((1, H3)),
        _const_spec((1, OUT_SIZE)),
        _const_spec((1, H1)), _const_spec((1, H1)),
        _const_spec((1, H2)), _const_spec((1, H2)),
        _const_spec((1, H3)), _const_spec((1, H3)),
    ]
    out_specs = (
        pl.BlockSpec((bt, OUT_SIZE), lambda i: (i, 0)),
        pl.BlockSpec((bt, H1), lambda i: (i, 0)),
        pl.BlockSpec((bt, H2), lambda i: (i, 0)),
        pl.BlockSpec((bt, H3), lambda i: (i, 0)),
    )
    out_shape = (
        jax.ShapeDtypeStruct((n_pad, OUT_SIZE), jnp.float32),
        jax.ShapeDtypeStruct((n_pad, H1), jnp.float32),
        jax.ShapeDtypeStruct((n_pad, H2), jnp.float32),
        jax.ShapeDtypeStruct((n_pad, H3), jnp.float32),
    )

    out_sum, s1, s2, s3 = pl.pallas_call(
        _rhy_asrnn_kernel,
        out_shape=out_shape,
        grid=grid,
        in_specs=in_specs,
        out_specs=out_specs,
        compiler_params=pltpu.CompilerParams(
            dimension_semantics=("parallel",)),
    )(
        packed, masks_packed,
        wh1_b, w2_b, wi3_b, params["wo"],
        params["b2"], params["bi3"], params["bo"],
        params["a1"], params["r1"], params["a2"], params["r2"],
        params["a3"], params["r3"],
    )

    # drop batch padding
    out_sum = out_sum[:N]
    s1 = s1[:N]
    s2 = s2[:N]
    s3 = s3[:N]

    outputs = out_sum / T
    hidden_spk = [s1 / T, s2 / T, s3 / T]
    layer_fr = jnp.array([
        s1.sum() / (N * H1 * T),
        s2.sum() / (N * H2 * T),
        s3.sum() / (N * H3 * T),
    ])
    return outputs, hidden_spk, layer_fr


if __name__ == "__main__":
    key = jax.random.PRNGKey(0)
    k_param, k_noise, k_x = jax.random.split(key, 3)

    params = build_params(k_param)
    masks_packed = build_masks_packed()

    # batch=2, psMNIST-style input (N, 1, 28, 28) -> flattened to (N, 784) inside
    x = jax.random.uniform(k_x, (2, 1, 28, 28), jnp.float32)

    fwd = jax.jit(rhy_asrnn_forward)
    outputs, hidden_spk, layer_fr = fwd(x, params, masks_packed, k_noise)
    jax.block_until_ready(outputs)
    jax.block_until_ready(hidden_spk)
    jax.block_until_ready(layer_fr)
    print("KERNEL_OK")
</pallas_src>

<mosaic_0001>
module attributes {stable_mosaic.version = 11 : i64} {
  func.func @_rhy_asrnn_kernel(%arg0: i32, %arg1: memref<98x8x192xf32, #tpu.memory_space<vmem>>, %arg2: memref<98x1x96xf32, #tpu.memory_space<vmem>>, %arg3: memref<32x32xbf16, #tpu.memory_space<vmem>>, %arg4: memref<64x32xbf16, #tpu.memory_space<vmem>>, %arg5: memref<32x32xbf16, #tpu.memory_space<vmem>>, %arg6: memref<32x10xf32, #tpu.memory_space<vmem>>, %arg7: memref<1x32xf32, #tpu.memory_space<vmem>>, %arg8: memref<1x32xf32, #tpu.memory_space<vmem>>, %arg9: memref<1x10xf32, #tpu.memory_space<vmem>>, %arg10: memref<1x32xf32, #tpu.memory_space<vmem>>, %arg11: memref<1x32xf32, #tpu.memory_space<vmem>>, %arg12: memref<1x32xf32, #tpu.memory_space<vmem>>, %arg13: memref<1x32xf32, #tpu.memory_space<vmem>>, %arg14: memref<1x32xf32, #tpu.memory_space<vmem>>, %arg15: memref<1x32xf32, #tpu.memory_space<vmem>>, %arg16: memref<8x10xf32, #tpu.memory_space<vmem>>, %arg17: memref<8x32xf32, #tpu.memory_space<vmem>>, %arg18: memref<8x32xf32, #tpu.memory_space<vmem>>, %arg19: memref<8x32xf32, #tpu.memory_space<vmem>>) attributes {dimension_semantics = [#tpu.dimension_semantics<parallel>], iteration_bounds = array<i64: 1>, scalar_prefetch = 0 : i64, scratch_operands = 0 : i64, tpu.core_type = #tpu.core_type<tc>, window_params = [{transform_indices = @transform_0, window_bounds = array<i64: 98, 8, 192>}, {pipeline_mode = #tpu.pipeline_mode<synchronous>, transform_indices = @transform_1, window_bounds = array<i64: 98, 1, 96>}, {pipeline_mode = #tpu.pipeline_mode<synchronous>, transform_indices = @transform_2, window_bounds = array<i64: 32, 32>}, {pipeline_mode = #tpu.pipeline_mode<synchronous>, transform_indices = @transform_3, window_bounds = array<i64: 64, 32>}, {pipeline_mode = #tpu.pipeline_mode<synchronous>, transform_indices = @transform_4, window_bounds = array<i64: 32, 32>}, {pipeline_mode = #tpu.pipeline_mode<synchronous>, transform_indices = @transform_5, window_bounds = array<i64: 32, 10>}, {pipeline_mode = #tpu.pipeline_mode<synchronous>, transform_indices = @transform_6, window_bounds = array<i64: 1, 32>}, {pipeline_mode = #tpu.pipeline_mode<synchronous>, transform_indices = @transform_7, window_bounds = array<i64: 1, 32>}, {pipeline_mode = #tpu.pipeline_mode<synchronous>, transform_indices = @transform_8, window_bounds = array<i64: 1, 10>}, {pipeline_mode = #tpu.pipeline_mode<synchronous>, transform_indices = @transform_9, window_bounds = array<i64: 1, 32>}, {pipeline_mode = #tpu.pipeline_mode<synchronous>, transform_indices = @transform_10, window_bounds = array<i64: 1, 32>}, {pipeline_mode = #tpu.pipeline_mode<synchronous>, transform_indices = @transform_11, window_bounds = array<i64: 1, 32>}, {pipeline_mode = #tpu.pipeline_mode<synchronous>, transform_indices = @transform_12, window_bounds = array<i64: 1, 32>}, {pipeline_mode = #tpu.pipeline_mode<synchronous>, transform_indices = @transform_13, window_bounds = array<i64: 1, 32>}, {pipeline_mode = #tpu.pipeline_mode<synchronous>, transform_indices = @transform_14, window_bounds = array<i64: 1, 32>}, {transform_indices = @transform_15, window_bounds = array<i64: 8, 10>}, {transform_indices = @transform_16, window_bounds = array<i64: 8, 32>}, {transform_indices = @transform_17, window_bounds = array<i64: 8, 32>}, {transform_indices = @transform_18, window_bounds = array<i64: 8, 32>}]} {
    %c0 = arith.constant 0 : index
    %c0_0 = arith.constant 0 : index
    %0 = vector.load %arg3[%c0, %c0_0] : memref<32x32xbf16, #tpu.memory_space<vmem>>, vector<32x32xbf16>
    %c0_1 = arith.constant 0 : index
    %c0_2 = arith.constant 0 : index
    %1 = vector.load %arg4[%c0_1, %c0_2] : memref<64x32xbf16, #tpu.memory_space<vmem>>, vector<64x32xbf16>
    %c0_3 = arith.constant 0 : index
    %c0_4 = arith.constant 0 : index
    %2 = vector.load %arg5[%c0_3, %c0_4] : memref<32x32xbf16, #tpu.memory_space<vmem>>, vector<32x32xbf16>
    %c0_5 = arith.constant 0 : index
    %c0_6 = arith.constant 0 : index
    %3 = vector.load %arg7[%c0_5, %c0_6] : memref<1x32xf32, #tpu.memory_space<vmem>>, vector<1x32xf32>
    %c0_7 = arith.constant 0 : index
    %c0_8 = arith.constant 0 : index
    %4 = vector.load %arg8[%c0_7, %c0_8] : memref<1x32xf32, #tpu.memory_space<vmem>>, vector<1x32xf32>
    %c0_9 = arith.constant 0 : index
    %c0_10 = arith.constant 0 : index
    %5 = vector.load %arg10[%c0_9, %c0_10] : memref<1x32xf32, #tpu.memory_space<vmem>>, vector<1x32xf32>
    %cst = arith.constant 1.000000e+00 : f32
    %6 = vector.broadcast %cst : f32 to vector<1x32xf32>
    %7 = arith.subf %6, %5 : vector<1x32xf32>
    %c0_11 = arith.constant 0 : index
    %c0_12 = arith.constant 0 : index
    %8 = vector.load %arg11[%c0_11, %c0_12] : memref<1x32xf32, #tpu.memory_space<vmem>>, vector<1x32xf32>
    %cst_13 = arith.constant 1.000000e+00 : f32
    %9 = vector.broadcast %cst_13 : f32 to vector<1x32xf32>
    %10 = arith.subf %9, %8 : vector<1x32xf32>
    %c0_14 = arith.constant 0 : index
    %c0_15 = arith.constant 0 : index
    %11 = vector.load %arg12[%c0_14, %c0_15] : memref<1x32xf32, #tpu.memory_space<vmem>>, vector<1x32xf32>
    %cst_16 = arith.constant 1.000000e+00 : f32
    %12 = vector.broadcast %cst_16 : f32 to vector<1x32xf32>
    %13 = arith.subf %12, %11 : vector<1x32xf32>
    %c0_17 = arith.constant 0 : index
    %c0_18 = arith.constant 0 : index
    %14 = vector.load %arg13[%c0_17, %c0_18] : memref<1x32xf32, #tpu.memory_space<vmem>>, vector<1x32xf32>
    %cst_19 = arith.constant 1.000000e+00 : f32
    %15 = vector.broadcast %cst_19 : f32 to vector<1x32xf32>
    %16 = arith.subf %15, %14 : vector<1x32xf32>
    %c0_20 = arith.constant 0 : index
    %c0_21 = arith.constant 0 : index
    %17 = vector.load %arg14[%c0_20, %c0_21] : memref<1x32xf32, #tpu.memory_space<vmem>>, vector<1x32xf32>
    %cst_22 = arith.constant 1.000000e+00 : f32
    %18 = vector.broadcast %cst_22 : f32 to vector<1x32xf32>
    %19 = arith.subf %18, %17 : vector<1x32xf32>
    %c0_23 = arith.constant 0 : index
    %c0_24 = arith.constant 0 : index
    %20 = vector.load %arg15[%c0_23, %c0_24] : memref<1x32xf32, #tpu.memory_space<vmem>>, vector<1x32xf32>
    %cst_25 = arith.constant 1.000000e+00 : f32
    %21 = vector.broadcast %cst_25 : f32 to vector<1x32xf32>
    %22 = arith.subf %21, %20 : vector<1x32xf32>
    %cst_26 = arith.constant 0.000000e+00 : f32
    %23 = vector.broadcast %cst_26 : f32 to vector<8x32xf32>
    %cst_27 = arith.constant 0.000000e+00 : f32
    %24 = vector.broadcast %cst_27 : f32 to vector<8x32xf32>
    %cst_28 = arith.constant 0.000000e+00 : f32
    %25 = vector.broadcast %cst_28 : f32 to vector<8x32xf32>
    %cst_29 = arith.constant 0.00999999977 : f32
    %26 = vector.broadcast %cst_29 : f32 to vector<8x32xf32>
    %cst_30 = arith.constant 0.00999999977 : f32
    %27 = vector.broadcast %cst_30 : f32 to vector<8x32xf32>
    %cst_31 = arith.constant 0.00999999977 : f32
    %28 = vector.broadcast %cst_31 : f32 to vector<8x32xf32>
    %c0_i32 = arith.constant 0 : i32
    %c49_i32 = arith.constant 49 : i32
    %29 = arith.addi %c0_i32, %c49_i32 : i32
    %c1_i32 = arith.constant 1 : i32
    %30:13 = scf.for %arg20 = %c0_i32 to %29 step %c1_i32 iter_args(%arg21 = %23, %arg22 = %23, %arg23 = %26, %arg24 = %24, %arg25 = %24, %arg26 = %27, %arg27 = %25, %arg28 = %25, %arg29 = %28, %arg30 = %23, %arg31 = %24, %arg32 = %25, %arg33 = %25) -> (vector<8x32xf32>, vector<8x32xf32>, vector<8x32xf32>, vector<8x32xf32>, vector<8x32xf32>, vector<8x32xf32>, vector<8x32xf32>, vector<8x32xf32>, vector<8x32xf32>, vector<8x32xf32>, vector<8x32xf32>, vector<8x32xf32>, vector<8x32xf32>)  : i32 {
      %c2_i32 = arith.constant 2 : i32
      %42 = arith.muli %arg20, %c2_i32 : i32
      %c0_i32_47 = arith.constant 0 : i32
      %43 = arith.addi %42, %c0_i32_47 : i32
      %44 = arith.index_cast %43 : i32 to index
      %c0_48 = arith.constant 0 : index
      %c0_49 = arith.constant 0 : index
      %45 = vector.load %arg1[%44, %c0_48, %c0_49] : memref<98x8x192xf32, #tpu.memory_space<vmem>>, vector<1x8x192xf32>
      %46 = vector.shape_cast %45 : vector<1x8x192xf32> to vector<8x192xf32>
      %47 = vector.extract_strided_slice %46 {offsets = [0, 0], sizes = [8, 32], strides = [1, 1]} : vector<8x192xf32> to vector<8x32xf32>
      %48 = vector.extract_strided_slice %46 {offsets = [0, 32], sizes = [8, 32], strides = [1, 1]} : vector<8x192xf32> to vector<8x32xf32>
      %49 = vector.extract_strided_slice %46 {offsets = [0, 64], sizes = [8, 32], strides = [1, 1]} : vector<8x192xf32> to vector<8x32xf32>
      %50 = vector.extract_strided_slice %46 {offsets = [0, 96], sizes = [8, 32], strides = [1, 1]} : vector<8x192xf32> to vector<8x32xf32>
      %51 = vector.extract_strided_slice %46 {offsets = [0, 128], sizes = [8, 32], strides = [1, 1]} : vector<8x192xf32> to vector<8x32xf32>
      %52 = vector.extract_strided_slice %46 {offsets = [0, 160], sizes = [8, 32], strides = [1, 1]} : vector<8x192xf32> to vector<8x32xf32>
      %53 = arith.index_cast %43 : i32 to index
      %c0_50 = arith.constant 0 : index
      %c0_51 = arith.constant 0 : index
      %54 = vector.load %arg2[%53, %c0_50, %c0_51] : memref<98x1x96xf32, #tpu.memory_space<vmem>>, vector<1x1x96xf32>
      %55 = vector.shape_cast %54 : vector<1x1x96xf32> to vector<1x96xf32>
      %56 = vector.extract_strided_slice %55 {offsets = [0, 0], sizes = [1, 32], strides = [1, 1]} : vector<1x96xf32> to vector<1x32xf32>
      %57 = vector.extract_strided_slice %55 {offsets = [0, 32], sizes = [1, 32], strides = [1, 1]} : vector<1x96xf32> to vector<1x32xf32>
      %58 = vector.extract_strided_slice %55 {offsets = [0, 64], sizes = [1, 32], strides = [1, 1]} : vector<1x96xf32> to vector<1x32xf32>
      %59 = arith.mulf %arg22, %48 : vector<8x32xf32>
      %60 = arith.truncf %59 : vector<8x32xf32> to vector<8x32xbf16>
      %cst_52 = arith.constant dense<0.000000e+00> : vector<8x32xf32>
      %61 = tpu.matmul %60, %0, %cst_52 {dimension_numbers = #tpu.dot_dimension_numbers<[1], [0], [0], [1], [0, 0, 1, 1], [], []>} : vector<8x32xbf16>, vector<32x32xbf16>, vector<8x32xf32> -> vector<8x32xf32>
      %62 = arith.addf %47, %61 : vector<8x32xf32>
      %63 = vector.broadcast %8 : vector<1x32xf32> to vector<8x32xf32>
      %64 = arith.mulf %63, %arg23 : vector<8x32xf32>
      %65 = vector.broadcast %10 : vector<1x32xf32> to vector<8x32xf32>
      %66 = arith.mulf %65, %59 : vector<8x32xf32>
      %67 = arith.addf %64, %66 : vector<8x32xf32>
      %cst_53 = arith.constant 1.800000e+00 : f32
      %68 = vector.broadcast %cst_53 : f32 to vector<8x32xf32>
      %69 = arith.mulf %68, %67 : vector<8x32xf32>
      %cst_54 = arith.constant 0.00999999977 : f32
      %70 = vector.broadcast %cst_54 : f32 to vector<8x32xf32>
      %71 = arith.addf %70, %69 : vector<8x32xf32>
      %72 = vector.broadcast %5 : vector<1x32xf32> to vector<8x32xf32>
      %73 = arith.mulf %arg21, %72 : vector<8x32xf32>
      %74 = vector.broadcast %7 : vector<1x32xf32> to vector<8x32xf32>
      %75 = arith.mulf %74, %62 : vector<8x32xf32>
      %76 = arith.addf %73, %75 : vector<8x32xf32>
      %77 = arith.mulf %71, %59 : vector<8x32xf32>
      %78 = arith.subf %76, %77 : vector<8x32xf32>
      %cst_55 = arith.constant 0.000000e+00 : f32
      %79 = vector.broadcast %cst_55 : f32 to vector<1x32xf32>
      %80 = arith.cmpf oeq, %56, %79 : vector<1x32xf32>
      %81 = vector.shape_cast %80 : vector<1x32xi1> to vector<1x32xi1>
      %82 = vector.broadcast %81 : vector<1x32xi1> to vector<8x32xi1>
      %83 = arith.select %82, %arg21, %78 : vector<8x32xi1>, vector<8x32xf32>
      %84 = arith.subf %83, %71 : vector<8x32xf32>
      %cst_56 = arith.constant 0.000000e+00 : f32
      %85 = vector.broadcast %cst_56 : f32 to vector<8x32xf32>
      %86 = arith.cmpf ogt, %84, %85 : vector<8x32xf32>
      %87 = arith.extui %86 : vector<8x32xi1> to vector<8x32xi32>
      %88 = arith.sitofp %87 : vector<8x32xi32> to vector<8x32xf32>
      %89 = vector.broadcast %56 : vector<1x32xf32> to vector<8x32xf32>
      %90 = arith.mulf %88, %89 : vector<8x32xf32>
      %91 = arith.addf %arg30, %90 : vector<8x32xf32>
      %92 = arith.mulf %90, %49 : vector<8x32xf32>
      %93 = arith.mulf %arg25, %50 : vector<8x32xf32>
      %94 = tpu.concatenate %92, %93 in 1 : vector<8x32xf32>, vector<8x32xf32> -> vector<8x64xf32>
      %95 = arith.truncf %94 : vector<8x64xf32> to vector<8x64xbf16>
      %cst_57 = arith.constant dense<0.000000e+00> : vector<8x32xf32>
      %96 = tpu.matmul %95, %1, %cst_57 {dimension_numbers = #tpu.dot_dimension_numbers<[1], [0], [0], [1], [0, 0, 1, 1], [], []>} : vector<8x64xbf16>, vector<64x32xbf16>, vector<8x32xf32> -> vector<8x32xf32>
      %97 = vector.broadcast %3 : vector<1x32xf32> to vector<8x32xf32>
      %98 = arith.addf %96, %97 : vector<8x32xf32>
      %99 = vector.broadcast %14 : vector<1x32xf32> to vector<8x32xf32>
      %100 = arith.mulf %99, %arg26 : vector<8x32xf32>
      %101 = vector.broadcast %16 : vector<1x32xf32> to vector<8x32xf32>
      %102 = arith.mulf %101, %93 : vector<8x32xf32>
      %103 = arith.addf %100, %102 : vector<8x32xf32>
      %cst_58 = arith.constant 1.800000e+00 : f32
      %104 = vector.broadcast %cst_58 : f32 to vector<8x32xf32>
      %105 = arith.mulf %104, %103 : vector<8x32xf32>
      %cst_59 = arith.constant 0.00999999977 : f32
      %106 = vector.broadcast %cst_59 : f32 to vector<8x32xf32>
      %107 = arith.addf %106, %105 : vector<8x32xf32>
      %108 = vector.broadcast %11 : vector<1x32xf32> to vector<8x32xf32>
      %109 = arith.mulf %arg24, %108 : vector<8x32xf32>
      %110 = vector.broadcast %13 : vector<1x32xf32> to vector<8x32xf32>
      %111 = arith.mulf %110, %98 : vector<8x32xf32>
      %112 = arith.addf %109, %111 : vector<8x32xf32>
      %113 = arith.mulf %107, %93 : vector<8x32xf32>
      %114 = arith.subf %112, %113 : vector<8x32xf32>
      %cst_60 = arith.constant 0.000000e+00 : f32
      %115 = vector.broadcast %cst_60 : f32 to vector<1x32xf32>
      %116 = arith.cmpf oeq, %57, %115 : vector<1x32xf32>
      %117 = vector.shape_cast %116 : vector<1x32xi1> to vector<1x32xi1>
      %118 = vector.broadcast %117 : vector<1x32xi1> to vector<8x32xi1>
      %119 = arith.select %118, %arg24, %114 : vector<8x32xi1>, vector<8x32xf32>
      %120 = arith.subf %119, %107 : vector<8x32xf32>
      %cst_61 = arith.constant 0.000000e+00 : f32
      %121 = vector.broadcast %cst_61 : f32 to vector<8x32xf32>
      %122 = arith.cmpf ogt, %120, %121 : vector<8x32xf32>
      %123 = arith.extui %122 : vector<8x32xi1> to vector<8x32xi32>
      %124 = arith.sitofp %123 : vector<8x32xi32> to vector<8x32xf32>
      %125 = vector.broadcast %57 : vector<1x32xf32> to vector<8x32xf32>
      %126 = arith.mulf %124, %125 : vector<8x32xf32>
      %127 = arith.addf %arg31, %126 : vector<8x32xf32>
      %128 = arith.mulf %126, %51 : vector<8x32xf32>
      %129 = arith.truncf %128 : vector<8x32xf32> to vector<8x32xbf16>
      %cst_62 = arith.constant dense<0.000000e+00> : vector<8x32xf32>
      %130 = tpu.matmul %129, %2, %cst_62 {dimension_numbers = #tpu.dot_dimension_numbers<[1], [0], [0], [1], [0, 0, 1, 1], [], []>} : vector<8x32xbf16>, vector<32x32xbf16>, vector<8x32xf32> -> vector<8x32xf32>
      %131 = vector.broadcast %4 : vector<1x32xf32> to vector<8x32xf32>
      %132 = arith.addf %130, %131 : vector<8x32xf32>
      %133 = vector.broadcast %20 : vector<1x32xf32> to vector<8x32xf32>
      %134 = arith.mulf %133, %arg29 : vector<8x32xf32>
      %135 = vector.broadcast %22 : vector<1x32xf32> to vector<8x32xf32>
      %136 = arith.mulf %135, %arg28 : vector<8x32xf32>
      %137 = arith.addf %134, %136 : vector<8x32xf32>
      %cst_63 = arith.constant 1.800000e+00 : f32
      %138 = vector.broadcast %cst_63 : f32 to vector<8x32xf32>
      %139 = arith.mulf %138, %137 : vector<8x32xf32>
      %cst_64 = arith.constant 0.00999999977 : f32
      %140 = vector.broadcast %cst_64 : f32 to vector<8x32xf32>
      %141 = arith.addf %140, %139 : vector<8x32xf32>
      %142 = vector.broadcast %17 : vector<1x32xf32> to vector<8x32xf32>
      %143 = arith.mulf %arg27, %142 : vector<8x32xf32>
      %144 = vector.broadcast %19 : vector<1x32xf32> to vector<8x32xf32>
      %145 = arith.mulf %144, %132 : vector<8x32xf32>
      %146 = arith.addf %143, %145 : vector<8x32xf32>
      %147 = arith.mulf %141, %arg28 : vector<8x32xf32>
      %148 = arith.subf %146, %147 : vector<8x32xf32>
      %cst_65 = arith.constant 0.000000e+00 : f32
      %149 = vector.broadcast %cst_65 : f32 to vector<1x32xf32>
      %150 = arith.cmpf oeq, %58, %149 : vector<1x32xf32>
      %151 = vector.shape_cast %150 : vector<1x32xi1> to vector<1x32xi1>
      %152 = vector.broadcast %151 : vector<1x32xi1> to vector<8x32xi1>
      %153 = arith.select %152, %arg27, %148 : vector<8x32xi1>, vector<8x32xf32>
      %154 = arith.subf %153, %141 : vector<8x32xf32>
      %cst_66 = arith.constant 0.000000e+00 : f32
      %155 = vector.broadcast %cst_66 : f32 to vector<8x32xf32>
      %156 = arith.cmpf ogt, %154, %155 : vector<8x32xf32>
      %157 = arith.extui %156 : vector<8x32xi1> to vector<8x32xi32>
      %158 = arith.sitofp %157 : vector<8x32xi32> to vector<8x32xf32>
      %159 = vector.broadcast %58 : vector<1x32xf32> to vector<8x32xf32>
      %160 = arith.mulf %158, %159 : vector<8x32xf32>
      %161 = arith.addf %arg32, %160 : vector<8x32xf32>
      %162 = arith.mulf %160, %52 : vector<8x32xf32>
      %163 = arith.addf %arg33, %162 : vector<8x32xf32>
      %c1_i32_67 = arith.constant 1 : i32
      %164 = arith.addi %42, %c1_i32_67 : i32
      %165 = arith.index_cast %164 : i32 to index
      %c0_68 = arith.constant 0 : index
      %c0_69 = arith.constant 0 : index
      %166 = vector.load %arg1[%165, %c0_68, %c0_69] : memref<98x8x192xf32, #tpu.memory_space<vmem>>, vector<1x8x192xf32>
      %167 = vector.shape_cast %166 : vector<1x8x192xf32> to vector<8x192xf32>
      %168 = vector.extract_strided_slice %167 {offsets = [0, 0], sizes = [8, 32], strides = [1, 1]} : vector<8x192xf32> to vector<8x32xf32>
      %169 = vector.extract_strided_slice %167 {offsets = [0, 32], sizes = [8, 32], strides = [1, 1]} : vector<8x192xf32> to vector<8x32xf32>
      %170 = vector.extract_strided_slice %167 {offsets = [0, 64], sizes = [8, 32], strides = [1, 1]} : vector<8x192xf32> to vector<8x32xf32>
      %171 = vector.extract_strided_slice %167 {offsets = [0, 96], sizes = [8, 32], strides = [1, 1]} : vector<8x192xf32> to vector<8x32xf32>
      %172 = vector.extract_strided_slice %167 {offsets = [0, 128], sizes = [8, 32], strides = [1, 1]} : vector<8x192xf32> to vector<8x32xf32>
      %173 = vector.extract_strided_slice %167 {offsets = [0, 160], sizes = [8, 32], strides = [1, 1]} : vector<8x192xf32> to vector<8x32xf32>
      %174 = arith.index_cast %164 : i32 to index
      %c0_70 = arith.constant 0 : index
      %c0_71 = arith.constant 0 : index
      %175 = vector.load %arg2[%174, %c0_70, %c0_71] : memref<98x1x96xf32, #tpu.memory_space<vmem>>, vector<1x1x96xf32>
      %176 = vector.shape_cast %175 : vector<1x1x96xf32> to vector<1x96xf32>
      %177 = vector.extract_strided_slice %176 {offsets = [0, 0], sizes = [1, 32], strides = [1, 1]} : vector<1x96xf32> to vector<1x32xf32>
      %178 = vector.extract_strided_slice %176 {offsets = [0, 32], sizes = [1, 32], strides = [1, 1]} : vector<1x96xf32> to vector<1x32xf32>
      %179 = vector.extract_strided_slice %176 {offsets = [0, 64], sizes = [1, 32], strides = [1, 1]} : vector<1x96xf32> to vector<1x32xf32>
      %180 = arith.mulf %92, %169 : vector<8x32xf32>
      %181 = arith.truncf %180 : vector<8x32xf32> to vector<8x32xbf16>
      %cst_72 = arith.constant dense<0.000000e+00> : vector<8x32xf32>
      %182 = tpu.matmul %181, %0, %cst_72 {dimension_numbers = #tpu.dot_dimension_numbers<[1], [0], [0], [1], [0, 0, 1, 1], [], []>} : vector<8x32xbf16>, vector<32x32xbf16>, vector<8x32xf32> -> vector<8x32xf32>
      %183 = arith.addf %168, %182 : vector<8x32xf32>
      %184 = vector.broadcast %8 : vector<1x32xf32> to vector<8x32xf32>
      %185 = arith.mulf %184, %67 : vector<8x32xf32>
      %186 = vector.broadcast %10 : vector<1x32xf32> to vector<8x32xf32>
      %187 = arith.mulf %186, %180 : vector<8x32xf32>
      %188 = arith.addf %185, %187 : vector<8x32xf32>
      %cst_73 = arith.constant 1.800000e+00 : f32
      %189 = vector.broadcast %cst_73 : f32 to vector<8x32xf32>
      %190 = arith.mulf %189, %188 : vector<8x32xf32>
      %cst_74 = arith.constant 0.00999999977 : f32
      %191 = vector.broadcast %cst_74 : f32 to vector<8x32xf32>
      %192 = arith.addf %191, %190 : vector<8x32xf32>
      %193 = vector.broadcast %5 : vector<1x32xf32> to vector<8x32xf32>
      %194 = arith.mulf %83, %193 : vector<8x32xf32>
      %195 = vector.broadcast %7 : vector<1x32xf32> to vector<8x32xf32>
      %196 = arith.mulf %195, %183 : vector<8x32xf32>
      %197 = arith.addf %194, %196 : vector<8x32xf32>
      %198 = arith.mulf %192, %180 : vector<8x32xf32>
      %199 = arith.subf %197, %198 : vector<8x32xf32>
      %cst_75 = arith.constant 0.000000e+00 : f32
      %200 = vector.broadcast %cst_75 : f32 to vector<1x32xf32>
      %201 = arith.cmpf oeq, %177, %200 : vector<1x32xf32>
      %202 = vector.shape_cast %201 : vector<1x32xi1> to vector<1x32xi1>
      %203 = vector.broadcast %202 : vector<1x32xi1> to vector<8x32xi1>
      %204 = arith.select %203, %83, %199 : vector<8x32xi1>, vector<8x32xf32>
      %205 = arith.subf %204, %192 : vector<8x32xf32>
      %cst_76 = arith.constant 0.000000e+00 : f32
      %206 = vector.broadcast %cst_76 : f32 to vector<8x32xf32>
      %207 = arith.cmpf ogt, %205, %206 : vector<8x32xf32>
      %208 = arith.extui %207 : vector<8x32xi1> to vector<8x32xi32>
      %209 = arith.sitofp %208 : vector<8x32xi32> to vector<8x32xf32>
      %210 = vector.broadcast %177 : vector<1x32xf32> to vector<8x32xf32>
      %211 = arith.mulf %209, %210 : vector<8x32xf32>
      %212 = arith.addf %91, %211 : vector<8x32xf32>
      %213 = arith.mulf %211, %170 : vector<8x32xf32>
      %214 = arith.mulf %128, %171 : vector<8x32xf32>
      %215 = tpu.concatenate %213, %214 in 1 : vector<8x32xf32>, vector<8x32xf32> -> vector<8x64xf32>
      %216 = arith.truncf %215 : vector<8x64xf32> to vector<8x64xbf16>
      %cst_77 = arith.constant dense<0.000000e+00> : vector<8x32xf32>
      %217 = tpu.matmul %216, %1, %cst_77 {dimension_numbers = #tpu.dot_dimension_numbers<[1], [0], [0], [1], [0, 0, 1, 1], [], []>} : vector<8x64xbf16>, vector<64x32xbf16>, vector<8x32xf32> -> vector<8x32xf32>
      %218 = vector.broadcast %3 : vector<1x32xf32> to vector<8x32xf32>
      %219 = arith.addf %217, %218 : vector<8x32xf32>
      %220 = vector.broadcast %14 : vector<1x32xf32> to vector<8x32xf32>
      %221 = arith.mulf %220, %103 : vector<8x32xf32>
      %222 = vector.broadcast %16 : vector<1x32xf32> to vector<8x32xf32>
      %223 = arith.mulf %222, %214 : vector<8x32xf32>
      %224 = arith.addf %221, %223 : vector<8x32xf32>
      %cst_78 = arith.constant 1.800000e+00 : f32
      %225 = vector.broadcast %cst_78 : f32 to vector<8x32xf32>
      %226 = arith.mulf %225, %224 : vector<8x32xf32>
      %cst_79 = arith.constant 0.00999999977 : f32
      %227 = vector.broadcast %cst_79 : f32 to vector<8x32xf32>
      %228 = arith.addf %227, %226 : vector<8x32xf32>
      %229 = vector.broadcast %11 : vector<1x32xf32> to vector<8x32xf32>
      %230 = arith.mulf %119, %229 : vector<8x32xf32>
      %231 = vector.broadcast %13 : vector<1x32xf32> to vector<8x32xf32>
      %232 = arith.mulf %231, %219 : vector<8x32xf32>
      %233 = arith.addf %230, %232 : vector<8x32xf32>
      %234 = arith.mulf %228, %214 : vector<8x32xf32>
      %235 = arith.subf %233, %234 : vector<8x32xf32>
      %cst_80 = arith.constant 0.000000e+00 : f32
      %236 = vector.broadcast %cst_80 : f32 to vector<1x32xf32>
      %237 = arith.cmpf oeq, %178, %236 : vector<1x32xf32>
      %238 = vector.shape_cast %237 : vector<1x32xi1> to vector<1x32xi1>
      %239 = vector.broadcast %238 : vector<1x32xi1> to vector<8x32xi1>
      %240 = arith.select %239, %119, %235 : vector<8x32xi1>, vector<8x32xf32>
      %241 = arith.subf %240, %228 : vector<8x32xf32>
      %cst_81 = arith.constant 0.000000e+00 : f32
      %242 = vector.broadcast %cst_81 : f32 to vector<8x32xf32>
      %243 = arith.cmpf ogt, %241, %242 : vector<8x32xf32>
      %244 = arith.extui %243 : vector<8x32xi1> to vector<8x32xi32>
      %245 = arith.sitofp %244 : vector<8x32xi32> to vector<8x32xf32>
      %246 = vector.broadcast %178 : vector<1x32xf32> to vector<8x32xf32>
      %247 = arith.mulf %245, %246 : vector<8x32xf32>
      %248 = arith.addf %127, %247 : vector<8x32xf32>
      %249 = arith.mulf %247, %172 : vector<8x32xf32>
      %250 = arith.truncf %249 : vector<8x32xf32> to vector<8x32xbf16>
      %cst_82 = arith.constant dense<0.000000e+00> : vector<8x32xf32>
      %251 = tpu.matmul %250, %2, %cst_82 {dimension_numbers = #tpu.dot_dimension_numbers<[1], [0], [0], [1], [0, 0, 1, 1], [], []>} : vector<8x32xbf16>, vector<32x32xbf16>, vector<8x32xf32> -> vector<8x32xf32>
      %252 = vector.broadcast %4 : vector<1x32xf32> to vector<8x32xf32>
      %253 = arith.addf %251, %252 : vector<8x32xf32>
      %254 = vector.broadcast %20 : vector<1x32xf32> to vector<8x32xf32>
      %255 = arith.mulf %254, %137 : vector<8x32xf32>
      %256 = vector.broadcast %22 : vector<1x32xf32> to vector<8x32xf32>
      %257 = arith.mulf %256, %162 : vector<8x32xf32>
      %258 = arith.addf %255, %257 : vector<8x32xf32>
      %cst_83 = arith.constant 1.800000e+00 : f32
      %259 = vector.broadcast %cst_83 : f32 to vector<8x32xf32>
      %260 = arith.mulf %259, %258 : vector<8x32xf32>
      %cst_84 = arith.constant 0.00999999977 : f32
      %261 = vector.broadcast %cst_84 : f32 to vector<8x32xf32>
      %262 = arith.addf %261, %260 : vector<8x32xf32>
      %263 = vector.broadcast %17 : vector<1x32xf32> to vector<8x32xf32>
      %264 = arith.mulf %153, %263 : vector<8x32xf32>
      %265 = vector.broadcast %19 : vector<1x32xf32> to vector<8x32xf32>
      %266 = arith.mulf %265, %253 : vector<8x32xf32>
      %267 = arith.addf %264, %266 : vector<8x32xf32>
      %268 = arith.mulf %262, %162 : vector<8x32xf32>
      %269 = arith.subf %267, %268 : vector<8x32xf32>
      %cst_85 = arith.constant 0.000000e+00 : f32
      %270 = vector.broadcast %cst_85 : f32 to vector<1x32xf32>
      %271 = arith.cmpf oeq, %179, %270 : vector<1x32xf32>
      %272 = vector.shape_cast %271 : vector<1x32xi1> to vector<1x32xi1>
      %273 = vector.broadcast %272 : vector<1x32xi1> to vector<8x32xi1>
      %274 = arith.select %273, %153, %269 : vector<8x32xi1>, vector<8x32xf32>
      %275 = arith.subf %274, %262 : vector<8x32xf32>
      %cst_86 = arith.constant 0.000000e+00 : f32
      %276 = vector.broadcast %cst_86 : f32 to vector<8x32xf32>
      %277 = arith.cmpf ogt, %275, %276 : vector<8x32xf32>
      %278 = arith.extui %277 : vector<8x32xi1> to vector<8x32xi32>
      %279 = arith.sitofp %278 : vector<8x32xi32> to vector<8x32xf32>
      %280 = vector.broadcast %179 : vector<1x32xf32> to vector<8x32xf32>
      %281 = arith.mulf %279, %280 : vector<8x32xf32>
      %282 = arith.addf %161, %281 : vector<8x32xf32>
      %283 = arith.mulf %281, %173 : vector<8x32xf32>
      %284 = arith.addf %163, %283 : vector<8x32xf32>
      scf.yield %204, %213, %188, %240, %249, %224, %274, %283, %258, %212, %248, %282, %284 : vector<8x32xf32>, vector<8x32xf32>, vector<8x32xf32>, vector<8x32xf32>, vector<8x32xf32>, vector<8x32xf32>, vector<8x32xf32>, vector<8x32xf32>, vector<8x32xf32>, vector<8x32xf32>, vector<8x32xf32>, vector<8x32xf32>, vector<8x32xf32>
    }
    %c49_i32_32 = arith.constant 49 : i32
    %c0_33 = arith.constant 0 : index
    %c0_34 = arith.constant 0 : index
    %31 = vector.load %arg6[%c0_33, %c0_34] : memref<32x10xf32, #tpu.memory_space<vmem>>, vector<32x10xf32>
    %cst_35 = arith.constant dense<0.000000e+00> : vector<8x10xf32>
    %32 = tpu.matmul %30#12, %31, %cst_35 {dimension_numbers = #tpu.dot_dimension_numbers<[1], [0], [0], [1], [0, 0, 1, 1], [], []>} : vector<8x32xf32>, vector<32x10xf32>, vector<8x10xf32> -> vector<8x10xf32>
    %c0_36 = arith.constant 0 : index
    %c0_37 = arith.constant 0 : index
    %33 = vector.load %arg9[%c0_36, %c0_37] : memref<1x10xf32, #tpu.memory_space<vmem>>, vector<1x10xf32>
    %cst_38 = arith.constant 9.800000e+01 : f32
    %34 = vector.broadcast %cst_38 : f32 to vector<1x10xf32>
    %35 = arith.mulf %34, %33 : vector<1x10xf32>
    %36 = vector.broadcast %35 : vector<1x10xf32> to vector<8x10xf32>
    %37 = arith.addf %32, %36 : vector<8x10xf32>
    %c0_39 = arith.constant 0 : index
    %c0_40 = arith.constant 0 : index
    %38 = vector.load %arg16[%c0_39, %c0_40] : memref<8x10xf32, #tpu.memory_space<vmem>>, vector<8x10xf32>
    tpu.vector_store %arg16[%c0_39, %c0_40], %37 {strides = array<i32>} : memref<8x10xf32, #tpu.memory_space<vmem>>, vector<8x10xf32>,
    %c0_41 = arith.constant 0 : index
    %c0_42 = arith.constant 0 : index
    %39 = vector.load %arg17[%c0_41, %c0_42] : memref<8x32xf32, #tpu.memory_space<vmem>>, vector<8x32xf32>
    tpu.vector_store %arg17[%c0_41, %c0_42], %30#9 {strides = array<i32>} : memref<8x32xf32, #tpu.memory_space<vmem>>, vector<8x32xf32>,
    %c0_43 = arith.constant 0 : index
    %c0_44 = arith.constant 0 : index
    %40 = vector.load %arg18[%c0_43, %c0_44] : memref<8x32xf32, #tpu.memory_space<vmem>>, vector<8x32xf32>
    tpu.vector_store %arg18[%c0_43, %c0_44], %30#10 {strides = array<i32>} : memref<8x32xf32, #tpu.memory_space<vmem>>, vector<8x32xf32>,
    %c0_45 = arith.constant 0 : index
    %c0_46 = arith.constant 0 : index
    %41 = vector.load %arg19[%c0_45, %c0_46] : memref<8x32xf32, #tpu.memory_space<vmem>>, vector<8x32xf32>
    tpu.vector_store %arg19[%c0_45, %c0_46], %30#11 {strides = array<i32>} : memref<8x32xf32, #tpu.memory_space<vmem>>, vector<8x32xf32>,
    return
  }
  func.func @transform_0(%arg0: i32) -> (i32, i32, i32) {
    %c0_i32 = arith.constant 0 : i32
    %c0_i32_0 = arith.constant 0 : i32
    %c0_i32_1 = arith.constant 0 : i32
    return %c0_i32, %arg0, %c0_i32_0 : i32, i32, i32
  }
  func.func @transform_1(%arg0: i32) -> (i32, i32, i32) {
    %c0_i32 = arith.constant 0 : i32
    %c0_i32_0 = arith.constant 0 : i32
    %c0_i32_1 = arith.constant 0 : i32
    %c0_i32_2 = arith.constant 0 : i32
    return %c0_i32, %c0_i32_0, %c0_i32_1 : i32, i32, i32
  }
  func.func @transform_2(%arg0: i32) -> (i32, i32) {
    %c0_i32 = arith.constant 0 : i32
    %c0_i32_0 = arith.constant 0 : i32
    %c0_i32_1 = arith.constant 0 : i32
    return %c0_i32, %c0_i32_0 : i32, i32
  }
  func.func @transform_3(%arg0: i32) -> (i32, i32) {
    %c0_i32 = arith.constant 0 : i32
    %c0_i32_0 = arith.constant 0 : i32
    %c0_i32_1 = arith.constant 0 : i32
    return %c0_i32, %c0_i32_0 : i32, i32
  }
  func.func @transform_4(%arg0: i32) -> (i32, i32) {
    %c0_i32 = arith.constant 0 : i32
    %c0_i32_0 = arith.constant 0 : i32
    %c0_i32_1 = arith.constant 0 : i32
    return %c0_i32, %c0_i32_0 : i32, i32
  }
  func.func @transform_5(%arg0: i32) -> (i32, i32) {
    %c0_i32 = arith.constant 0 : i32
    %c0_i32_0 = arith.constant 0 : i32
    %c0_i32_1 = arith.constant 0 : i32
    return %c0_i32, %c0_i32_0 : i32, i32
  }
  func.func @transform_6(%arg0: i32) -> (i32, i32) {
    %c0_i32 = arith.constant 0 : i32
    %c0_i32_0 = arith.constant 0 : i32
    %c0_i32_1 = arith.constant 0 : i32
    return %c0_i32, %c0_i32_0 : i32, i32
  }
  func.func @transform_7(%arg0: i32) -> (i32, i32) {
    %c0_i32 = arith.constant 0 : i32
    %c0_i32_0 = arith.constant 0 : i32
    %c0_i32_1 = arith.constant 0 : i32
    return %c0_i32, %c0_i32_0 : i32, i32
  }
  func.func @transform_8(%arg0: i32) -> (i32, i32) {
    %c0_i32 = arith.constant 0 : i32
    %c0_i32_0 = arith.constant 0 : i32
    %c0_i32_1 = arith.constant 0 : i32
    return %c0_i32, %c0_i32_0 : i32, i32
  }
  func.func @transform_9(%arg0: i32) -> (i32, i32) {
    %c0_i32 = arith.constant 0 : i32
    %c0_i32_0 = arith.constant 0 : i32
    %c0_i32_1 = arith.constant 0 : i32
    return %c0_i32, %c0_i32_0 : i32, i32
  }
  func.func @transform_10(%arg0: i32) -> (i32, i32) {
    %c0_i32 = arith.constant 0 : i32
    %c0_i32_0 = arith.constant 0 : i32
    %c0_i32_1 = arith.constant 0 : i32
    return %c0_i32, %c0_i32_0 : i32, i32
  }
  func.func @transform_11(%arg0: i32) -> (i32, i32) {
    %c0_i32 = arith.constant 0 : i32
    %c0_i32_0 = arith.constant 0 : i32
    %c0_i32_1 = arith.constant 0 : i32
    return %c0_i32, %c0_i32_0 : i32, i32
  }
  func.func @transform_12(%arg0: i32) -> (i32, i32) {
    %c0_i32 = arith.constant 0 : i32
    %c0_i32_0 = arith.constant 0 : i32
    %c0_i32_1 = arith.constant 0 : i32
    return %c0_i32, %c0_i32_0 : i32, i32
  }
  func.func @transform_13(%arg0: i32) -> (i32, i32) {
    %c0_i32 = arith.constant 0 : i32
    %c0_i32_0 = arith.constant 0 : i32
    %c0_i32_1 = arith.constant 0 : i32
    return %c0_i32, %c0_i32_0 : i32, i32
  }
  func.func @transform_14(%arg0: i32) -> (i32, i32) {
    %c0_i32 = arith.constant 0 : i32
    %c0_i32_0 = arith.constant 0 : i32
    %c0_i32_1 = arith.constant 0 : i32
    return %c0_i32, %c0_i32_0 : i32, i32
  }
  func.func @transform_15(%arg0: i32) -> (i32, i32) {
    %c0_i32 = arith.constant 0 : i32
    %c0_i32_0 = arith.constant 0 : i32
    return %arg0, %c0_i32 : i32, i32
  }
  func.func @transform_16(%arg0: i32) -> (i32, i32) {
    %c0_i32 = arith.constant 0 : i32
    %c0_i32_0 = arith.constant 0 : i32
    return %arg0, %c0_i32 : i32, i32
  }
  func.func @transform_17(%arg0: i32) -> (i32, i32) {
    %c0_i32 = arith.constant 0 : i32
    %c0_i32_0 = arith.constant 0 : i32
    return %arg0, %c0_i32 : i32, i32
  }
  func.func @transform_18(%arg0: i32) -> (i32, i32) {
    %c0_i32 = arith.constant 0 : i32
    %c0_i32_0 = arith.constant 0 : i32
    return %arg0, %c0_i32 : i32, i32
  }
}

</mosaic_0001>

<llo_original>
// kernel: rhy_asrnn_forward.3
$region0: #{rhy_asrnn_forward.3}
  #allocation0 [shape = 'u32[]', space=smem, size = 0x4, offset = 0x4, fixed_abs, tag = 'smem constant byte address 0x4 - core index']
  #allocation1 [shape = 'u32[144,128]{1,0:T(1,128)}', space=vmem, size = 0x12000, scoped, tag = 'internal scratch']
  %s0 = inlined_call_operand.vmem [shape: f32[98,8,192], index: 0, kind: input, shape index: {}]
  %s1 = inlined_call_operand.vmem [shape: f32[98,1,96], index: 1, kind: input, shape index: {}]
  %s2 = inlined_call_operand.vmem [shape: bf16[32,32], index: 2, kind: input, shape index: {}]
  %s3 = inlined_call_operand.vmem [shape: bf16[64,32], index: 3, kind: input, shape index: {}]
  %s4 = inlined_call_operand.vmem [shape: bf16[32,32], index: 4, kind: input, shape index: {}]
  %s5 = inlined_call_operand.vmem [shape: f32[32,10], index: 5, kind: input, shape index: {}]
  %s6 = inlined_call_operand.vmem [shape: f32[1,32], index: 6, kind: input, shape index: {}]
  %s7 = inlined_call_operand.vmem [shape: f32[1,32], index: 7, kind: input, shape index: {}]
  %s8 = inlined_call_operand.vmem [shape: f32[1,10], index: 8, kind: input, shape index: {}]
  %s9 = inlined_call_operand.vmem [shape: f32[1,32], index: 9, kind: input, shape index: {}]
  %s10 = inlined_call_operand.vmem [shape: f32[1,32], index: 10, kind: input, shape index: {}]
  %s11 = inlined_call_operand.vmem [shape: f32[1,32], index: 11, kind: input, shape index: {}]
  %s12 = inlined_call_operand.vmem [shape: f32[1,32], index: 12, kind: input, shape index: {}]
  %s13 = inlined_call_operand.vmem [shape: f32[1,32], index: 13, kind: input, shape index: {}]
  %s14 = inlined_call_operand.vmem [shape: f32[1,32], index: 14, kind: input, shape index: {}]
  %s15 = inlined_call_operand.vmem [shape: f32[8,10], index: 15, kind: output, shape index: {0}]
  %s16 = inlined_call_operand.vmem [shape: f32[8,32], index: 16, kind: output, shape index: {1}]
  %s17 = inlined_call_operand.vmem [shape: f32[8,32], index: 17, kind: output, shape index: {2}]
  %s18 = inlined_call_operand.vmem [shape: f32[8,32], index: 18, kind: output, shape index: {3}]
  %19 = xla_tuple %s15, %s16, %s17, %s18
  %s20 = sld [smem:[#allocation0]]
  $region101: #{rhy_asrnn_forward.3} parent=0
    _
  %s22 = ssub.s32 1, %s20
  %s23 = scalar_select 0, %s22, %s20
  // Predicated region
  $region2: #{rhy_asrnn_forward.3} parent=0 // pred_check
    _
  $region3: #{rhy_asrnn_forward.3} parent=0 // pred_check_branch
    %25 = sbr.rel (0) target = $region5
  $region4: #{rhy_asrnn_forward.3} parent=0 // pred_region
    _
  $region5: #{rhy_asrnn_forward.3} parent=0 // pred_fallthru
    _
  // Predicated region
  $region6: #{rhy_asrnn_forward.3} parent=0 // pred_check
    _
  $region7: #{rhy_asrnn_forward.3} parent=0 // pred_check_branch
    %27 = sbr.rel (0) target = $region9
  $region8: #{rhy_asrnn_forward.3} parent=0 // pred_region
    _
  $region9: #{rhy_asrnn_forward.3} parent=0 // pred_fallthru
    _
  // Predicated region
  $region10: #{rhy_asrnn_forward.3} parent=0 // pred_check
    _
  $region11: #{rhy_asrnn_forward.3} parent=0 // pred_check_branch
    %29 = sbr.rel (0) target = $region13
  $region12: #{rhy_asrnn_forward.3} parent=0 // pred_region
    _
  $region13: #{rhy_asrnn_forward.3} parent=0 // pred_fallthru
    _
  // Predicated region
  $region14: #{rhy_asrnn_forward.3} parent=0 // pred_check
    _
  $region15: #{rhy_asrnn_forward.3} parent=0 // pred_check_branch
    %31 = sbr.rel (0) target = $region17
  $region16: #{rhy_asrnn_forward.3} parent=0 // pred_region
    _
  $region17: #{rhy_asrnn_forward.3} parent=0 // pred_fallthru
    _
  // Predicated region
  $region18: #{rhy_asrnn_forward.3} parent=0 // pred_check
    _
  $region19: #{rhy_asrnn_forward.3} parent=0 // pred_check_branch
    %33 = sbr.rel (0) target = $region21
  $region20: #{rhy_asrnn_forward.3} parent=0 // pred_region
    _
  $region21: #{rhy_asrnn_forward.3} parent=0 // pred_fallthru
    _
  // Predicated region
  $region22: #{rhy_asrnn_forward.3} parent=0 // pred_check
    _
  $region23: #{rhy_asrnn_forward.3} parent=0 // pred_check_branch
    %35 = sbr.rel (0) target = $region25
  $region24: #{rhy_asrnn_forward.3} parent=0 // pred_region
    _
  $region25: #{rhy_asrnn_forward.3} parent=0 // pred_fallthru
    _
  // Predicated region
  $region26: #{rhy_asrnn_forward.3} parent=0 // pred_check
    _
  $region27: #{rhy_asrnn_forward.3} parent=0 // pred_check_branch
    %37 = sbr.rel (0) target = $region29
  $region28: #{rhy_asrnn_forward.3} parent=0 // pred_region
    _
  $region29: #{rhy_asrnn_forward.3} parent=0 // pred_fallthru
    _
  // Predicated region
  $region30: #{rhy_asrnn_forward.3} parent=0 // pred_check
    _
  $region31: #{rhy_asrnn_forward.3} parent=0 // pred_check_branch
    %39 = sbr.rel (0) target = $region33
  $region32: #{rhy_asrnn_forward.3} parent=0 // pred_region
    _
  $region33: #{rhy_asrnn_forward.3} parent=0 // pred_fallthru
    _
  // Predicated region
  $region34: #{rhy_asrnn_forward.3} parent=0 // pred_check
    _
  $region35: #{rhy_asrnn_forward.3} parent=0 // pred_check_branch
    %41 = sbr.rel (0) target = $region37
  $region36: #{rhy_asrnn_forward.3} parent=0 // pred_region
    _
  $region37: #{rhy_asrnn_forward.3} parent=0 // pred_fallthru
    _
  // Predicated region
  $region38: #{rhy_asrnn_forward.3} parent=0 // pred_check
    _
  $region39: #{rhy_asrnn_forward.3} parent=0 // pred_check_branch
    %43 = sbr.rel (0) target = $region41
  $region40: #{rhy_asrnn_forward.3} parent=0 // pred_region
    _
  $region41: #{rhy_asrnn_forward.3} parent=0 // pred_fallthru
    _
  // Predicated region
  $region42: #{rhy_asrnn_forward.3} parent=0 // pred_check
    _
  $region43: #{rhy_asrnn_forward.3} parent=0 // pred_check_branch
    %45 = sbr.rel (0) target = $region45
  $region44: #{rhy_asrnn_forward.3} parent=0 // pred_region
    _
  $region45: #{rhy_asrnn_forward.3} parent=0 // pred_fallthru
    _
  // Predicated region
  $region46: #{rhy_asrnn_forward.3} parent=0 // pred_check
    _
  $region47: #{rhy_asrnn_forward.3} parent=0 // pred_check_branch
    %47 = sbr.rel (0) target = $region49
  $region48: #{rhy_asrnn_forward.3} parent=0 // pred_region
    _
  $region49: #{rhy_asrnn_forward.3} parent=0 // pred_fallthru
    _
  // Predicated region
  $region50: #{rhy_asrnn_forward.3} parent=0 // pred_check
    _
  $region51: #{rhy_asrnn_forward.3} parent=0 // pred_check_branch
    %49 = sbr.rel (0) target = $region53
  $region52: #{rhy_asrnn_forward.3} parent=0 // pred_region
    _
  $region53: #{rhy_asrnn_forward.3} parent=0 // pred_fallthru
    _
  // Predicated region
  $region54: #{rhy_asrnn_forward.3} parent=0 // pred_check
    _
  $region55: #{rhy_asrnn_forward.3} parent=0 // pred_check_branch
    %51 = sbr.rel (0) target = $region57
  $region56: #{rhy_asrnn_forward.3} parent=0 // pred_region
    _
  $region57: #{rhy_asrnn_forward.3} parent=0 // pred_fallthru
    _
  // Predicated region
  $region58: #{rhy_asrnn_forward.3} parent=0 // pred_check
    _
  $region59: #{rhy_asrnn_forward.3} parent=0 // pred_check_branch
    %53 = sbr.rel (0) target = $region61
  $region60: #{rhy_asrnn_forward.3} parent=0 // pred_region
    _
  $region61: #{rhy_asrnn_forward.3} parent=0 // pred_fallthru
    _
  %v55 = vld [vmem:[%s2] sm:$0xf]
  %v56 = vld [vmem:[%s2 + $0x4] sm:$0xf]
  %v57 = vld [vmem:[%s2 + $0x8] sm:$0xf]
  %v58 = vld [vmem:[%s2 + $0xc] sm:$0xf]
  %v59 = vld [vmem:[%s3] sm:$0xf]
  %v60 = vld [vmem:[%s3 + $0x4] sm:$0xf]
  %v61 = vld [vmem:[%s3 + $0x8] sm:$0xf]
  %v62 = vld [vmem:[%s3 + $0xc] sm:$0xf]
  %v63 = vld [vmem:[%s3 + $0x10] sm:$0xf]
  %v64 = vld [vmem:[%s3 + $0x14] sm:$0xf]
  %v65 = vld [vmem:[%s3 + $0x18] sm:$0xf]
  %v66 = vld [vmem:[%s3 + $0x1c] sm:$0xf]
  %v67 = vld [vmem:[%s4] sm:$0xf]
  %v68 = vld [vmem:[%s4 + $0x4] sm:$0xf]
  %v69 = vld [vmem:[%s4 + $0x8] sm:$0xf]
  %v70 = vld [vmem:[%s4 + $0xc] sm:$0xf]
  %v71 = vld [vmem:[%s6] sm:$0x1]
  %v72 = vld [vmem:[%s7] sm:$0x1]
  %v73 = vld [vmem:[%s9] sm:$0x1]
  %v74 = vsub.f32 1.0, %v73
  %v75 = vld [vmem:[%s10] sm:$0x1]
  %v76 = vsub.f32 1.0, %v75
  %v77 = vld [vmem:[%s11] sm:$0x1]
  %v78 = vsub.f32 1.0, %v77
  %v79 = vld [vmem:[%s12] sm:$0x1]
  %v80 = vsub.f32 1.0, %v79
  %v81 = vld [vmem:[%s13] sm:$0x1]
  %v82 = vsub.f32 1.0, %v81
  %v83 = vld [vmem:[%s14] sm:$0x1]
  %v84 = vsub.f32 1.0, %v83
  loop: start=0, step=1, limit=49
  $region62: #{rhy_asrnn_forward.3} parent=0 // loop_pre_header
    _
  $region63: #{rhy_asrnn_forward.3} parent=0 // loop_header
    %s86 = sphi 0, %s90
    %p87 = scmp.ge.s32.totalorder %s86, 49
    %v91 = vphi 0.0, %v575
    %v92 = vphi 0.0, %v591
    %v93 = vphi 0.01, %v560
    %v94 = vphi 0.0, %v660
    %v95 = vphi 0.0, %v675
    %v96 = vphi 0.01, %v644
    %v97 = vphi 0.0, %v745
    %v98 = vphi 0.0, %v756
    %v99 = vphi 0.01, %v729
    %v100 = vphi 0.0, %v587
    %v101 = vphi 0.0, %v670
    %v102 = vphi 0.0, %v755
    %v103 = vphi 0.0, %v757
  $region64: #{rhy_asrnn_forward.3} parent=0 // loop_header_branch
    %89 = sbr.rel (%p87) target = $region68
  $region65: #{rhy_asrnn_forward.3} parent=0 // loop_body
    %s104 = smul.u32 %s86, 2
    %s105 = smul.u32 %s104, 2
    %s106 = smul.addr %s105, 8
    %s107 = scalar_lea.vmem %s0, %s106
    %v108 = vld [vmem:[%s107] sm:$0xff]
    %v109 = vld [vmem:[%s107 + $0x8] sm:$0xff]
    %s110 = scalar_lea.vmem %s1, %s104
    %v111 = vld [vmem:[%s110] sm:$0x1]
    %113 = vrot.lane.b32.xlu0 %v108, 96
    %v114 = vpop.permute.xlu0 %113
    %v116 = vmul.f32 %v92, %v114
    %v117 = vpack.c.bf16 %v116, %v116
    %v122 = vunpack.c.l.b16 %v55
    %v123 = vunpack.c.l.b16 %v56
    %v124 = vunpack.c.l.b16 %v57
    %v125 = vunpack.c.l.b16 %v58
    %v126 = vpack.c.b16 %v123, %v122
    %v127 = vpack.c.b16 %v125, %v124
    %vm130 = vcmask 261120
    %v132 = vsel %vm130, %v117, 0
    %134 = vmatprep.subr.bf16.mxu0 0
    %135 = vmatpush1.bf16.msra.mxu0 0
    %136 = vmatprep.subr.bf16.mxu0 0
    %137 = vmatpush1.bf16.msra.mxu0 0
    %138 = vmatprep.subr.bf16.mxu0 0
    %139 = vmatpush1.bf16.msra.mxu0 0
    %140 = vmatprep.subr.bf16.mxu0 0
    %141 = vmatpush1.bf16.msra.mxu0 0
    %142 = vmatprep.subr.bf16.mxu0 0
    %143 = vmatpush1.bf16.msra.mxu0 0
    %144 = vmatprep.subr.bf16.mxu0 0
    %145 = vmatpush1.bf16.msra.mxu0 0
    %146 = vmatprep.subr.bf16.mxu0 0
    %147 = vmatpush1.bf16.msra.mxu0 %v127
    %148 = vmatprep.subr.bf16.mxu0 0
    %149 = vmatpush1.bf16.msra.mxu0 %v126
    %150 = vmatprep.subr.bf16.mxu0 0
    %151 = vmatpush2.bf16.msra.mxu0 0
    %152 = vmatprep.subr.bf16.mxu0 0
    %153 = vmatpush2.bf16.msra.mxu0 0
    %154 = vmatprep.subr.bf16.mxu0 0
    %155 = vmatpush2.bf16.msra.mxu0 0
    %156 = vmatprep.subr.bf16.mxu0 0
    %157 = vmatpush2.bf16.msra.mxu0 0
    %158 = vmatprep.subr.bf16.mxu0 0
    %159 = vmatpush2.bf16.msra.mxu0 0
    %160 = vmatprep.subr.bf16.mxu0 0
    %161 = vmatpush2.bf16.msra.mxu0 0
    %162 = vmatprep.subr.bf16.mxu0 0
    %163 = vmatpush2.bf16.msra.mxu0 0
    %164 = vmatprep.subr.bf16.mxu0 0
    %165 = vmatpush2.bf16.msra.mxu0 0
    %166 = vmatprep.mubr.bf16.mxu0 0
    %167 = vmatmul.mubr.bf16.gmra.mxu0 %v132
    %v168 = vpop.f32.mrf.mxu0
    %v169 = vadd.f32 0.0, %v168
    %v170 = vpop.f32.mrf.mxu0
    %v171 = vpop.f32.mrf.mxu0
    %v172 = vpop.f32.mrf.mxu0
    %173 = vdwg.mxu0
    %v174 = vadd.f32 %v108, %v169
    %v176 = vlaneseq
    %v177 = vshrl.u32 %v176, 7
    %v178 = vsub.s32 0, %v177
    %v179 = vrot.slane %v75, %v178
    %v181 = vmul.f32 %v179, %v93
    %v183 = vlaneseq
    %v184 = vshrl.u32 %v183, 7
    %v185 = vsub.s32 0, %v184
    %v186 = vrot.slane %v76, %v185
    %v188 = vmul.f32 %v186, %v116
    %v189 = vadd.f32 %v181, %v188
    %v190 = vmul.f32 %v189, 1.8
    %v191 = vadd.f32 %v190, 0.01
    %v193 = vlaneseq
    %v194 = vshrl.u32 %v193, 7
    %v195 = vsub.s32 0, %v194
    %v196 = vrot.slane %v73, %v195
    %v198 = vmul.f32 %v91, %v196
    %v200 = vlaneseq
    %v201 = vshrl.u32 %v200, 7
    %v202 = vsub.s32 0, %v201
    %v203 = vrot.slane %v74, %v202
    %v205 = vmul.f32 %v203, %v174
    %v206 = vadd.f32 %v198, %v205
    %v207 = vmul.f32 %v191, %v116
    %v208 = vsub.f32 %v206, %v207
    %vm209 = vcmp.eq.f32.partialorder %v111, 0.0
    %v210 = vsel %vm209, 1, 0
    %v211 = vlaneseq
    %v212 = vshrl.u32 %v211, 7
    %v213 = vsub.s32 0, %v212
    %v214 = vrot.slane %v210, %v213
    %vm215 = vcmp.eq.s32.totalorder %v214, 1
    %v216 = vsel %vm215, %v91, %v208
    %v217 = vsub.f32 %v216, %v191
    %vm218 = vcmp.gt.f32.partialorder %v217, 0.0
    %v219 = vsel %vm218, 1, 0
    %v220 = vcvt.s32.f32 %v219
    %v222 = vlaneseq
    %v223 = vshrl.u32 %v222, 7
    %v224 = vsub.s32 0, %v223
    %v225 = vrot.slane %v111, %v224
    %v227 = vmul.f32 %v220, %v225
    %v228 = vadd.f32 %v100, %v227
    %229 = vrot.lane.b32.xlu0 %v108, 64
    %v230 = vpop.permute.xlu0 %229
    %v232 = vmul.f32 %v227, %v230
    %v233 = vmul.f32 %v95, %v230
    %v234 = vsel %vm130, %v232, %v233
    %v235 = vpack.c.bf16 %v234, %v234
    %v237 = vlaneseq
    %v238 = vshrl.u32 %v237, 7
    %v239 = vsub.s32 0, %v238
    %v240 = vrot.slane %v71, %v239
    %v250 = vunpack.c.l.b16 %v59
    %v251 = vunpack.c.l.b16 %v60
    %v252 = vunpack.c.l.b16 %v61
    %v253 = vunpack.c.l.b16 %v62
    %v254 = vunpack.c.l.b16 %v63
    %v255 = vunpack.c.l.b16 %v64
    %v256 = vunpack.c.l.b16 %v65
    %v257 = vunpack.c.l.b16 %v66
    %v258 = vpack.c.b16 %v251, %v250
    %v259 = vpack.c.b16 %v253, %v252
    %v260 = vpack.c.b16 %v255, %v254
    %v261 = vpack.c.b16 %v257, %v256
    %vm266 = vcmask 523264
    %v268 = vsel %vm266, %v235, 0
    %270 = vmatprep.subr.bf16.mxu0 0
    %271 = vmatpush1.bf16.msra.mxu0 0
    %272 = vmatprep.subr.bf16.mxu0 0
    %273 = vmatpush1.bf16.msra.mxu0 0
    %274 = vmatprep.subr.bf16.mxu0 0
    %275 = vmatpush1.bf16.msra.mxu0 0
    %276 = vmatprep.subr.bf16.mxu0 0
    %277 = vmatpush1.bf16.msra.mxu0 0
    %278 = vmatprep.subr.bf16.mxu0 0
    %279 = vmatpush1.bf16.msra.mxu0 %v261
    %280 = vmatprep.subr.bf16.mxu0 0
    %281 = vmatpush1.bf16.msra.mxu0 %v260
    %282 = vmatprep.subr.bf16.mxu0 0
    %283 = vmatpush1.bf16.msra.mxu0 %v259
    %284 = vmatprep.subr.bf16.mxu0 0
    %285 = vmatpush1.bf16.msra.mxu0 %v258
    %286 = vmatprep.subr.bf16.mxu0 0
    %287 = vmatpush2.bf16.msra.mxu0 0
    %288 = vmatprep.subr.bf16.mxu0 0
    %289 = vmatpush2.bf16.msra.mxu0 0
    %290 = vmatprep.subr.bf16.mxu0 0
    %291 = vmatpush2.bf16.msra.mxu0 0
    %292 = vmatprep.subr.bf16.mxu0 0
    %293 = vmatpush2.bf16.msra.mxu0 0
    %294 = vmatprep.subr.bf16.mxu0 0
    %295 = vmatpush2.bf16.msra.mxu0 0
    %296 = vmatprep.subr.bf16.mxu0 0
    %297 = vmatpush2.bf16.msra.mxu0 0
    %298 = vmatprep.subr.bf16.mxu0 0
    %299 = vmatpush2.bf16.msra.mxu0 0
    %300 = vmatprep.subr.bf16.mxu0 0
    %301 = vmatpush2.bf16.msra.mxu0 0
    %302 = vmatprep.mubr.bf16.mxu0 0
    %303 = vmatmul.mubr.bf16.gmra.mxu0 %v268
    %v304 = vpop.f32.mrf.mxu0
    %v305 = vadd.f32 %v240, %v304
    %v306 = vpop.f32.mrf.mxu0
    %v307 = vpop.f32.mrf.mxu0
    %v308 = vpop.f32.mrf.mxu0
    %309 = vdwg.mxu0
    %v311 = vlaneseq
    %v312 = vshrl.u32 %v311, 7
    %v313 = vsub.s32 0, %v312
    %v314 = vrot.slane %v79, %v313
    %v316 = vmul.f32 %v314, %v96
    %v318 = vlaneseq
    %v319 = vshrl.u32 %v318, 7
    %v320 = vsub.s32 0, %v319
    %v321 = vrot.slane %v80, %v320
    %324 = vrot.lane.b32.xlu0 %v233, 96
    %v325 = vpop.permute.xlu0 %324
    %v327 = vmul.f32 %v321, %v325
    %v328 = vadd.f32 %v316, %v327
    %v329 = vmul.f32 %v328, 1.8
    %v330 = vadd.f32 %v329, 0.01
    %v332 = vlaneseq
    %v333 = vshrl.u32 %v332, 7
    %v334 = vsub.s32 0, %v333
    %v335 = vrot.slane %v77, %v334
    %336 = vrot.lane.b32.xlu0 %v335, 32
    %v337 = vpop.permute.xlu0 %336
    %v339 = vmul.f32 %v94, %v337
    %v341 = vlaneseq
    %v342 = vshrl.u32 %v341, 7
    %v343 = vsub.s32 0, %v342
    %v344 = vrot.slane %v78, %v343
    %v346 = vmul.f32 %v344, %v305
    %348 = vrot.lane.b32.xlu0 %v346, 32
    %v349 = vpop.permute.xlu0 %348
    %v351 = vadd.f32 %v339, %v349
    %v352 = vmul.f32 %v330, %v325
    %354 = vrot.lane.b32.xlu0 %v352, 32
    %v355 = vpop.permute.xlu0 %354
    %v357 = vsub.f32 %v351, %v355
    %v358 = vsel %vm215, %v94, %v357
    %360 = vrot.lane.b32.xlu0 %v330, 32
    %v361 = vpop.permute.xlu0 %360
    %v363 = vsub.f32 %v358, %v361
    %vm364 = vcmp.gt.f32.partialorder %v363, 0.0
    %v365 = vsel %vm364, 1, 0
    %v366 = vcvt.s32.f32 %v365
    %v367 = vmul.f32 %v366, %v225
    %v368 = vadd.f32 %v101, %v367
    %370 = vrot.lane.b32.xlu0 %v109, 32
    %v371 = vpop.permute.xlu0 %370
    %v373 = vmul.f32 %v367, %v371
    %v374 = vpack.c.bf16 %v373, %v373
    %v376 = vlaneseq
    %v377 = vshrl.u32 %v376, 7
    %v378 = vsub.s32 0, %v377
    %v379 = vrot.slane %v72, %v378
    %382 = vrot.lane.b32.xlu0 %v374, 96
    %v383 = vpop.permute.xlu0 %382
    %v388 = vunpack.c.l.b16 %v67
    %v389 = vunpack.c.l.b16 %v68
    %v390 = vunpack.c.l.b16 %v69
    %v391 = vunpack.c.l.b16 %v70
    %v392 = vpack.c.b16 %v389, %v388
    %v393 = vpack.c.b16 %v391, %v390
    %v397 = vsel %vm130, %v383, 0
    %399 = vmatprep.subr.bf16.mxu0 0
    %400 = vmatpush1.bf16.msra.mxu0 0
    %401 = vmatprep.subr.bf16.mxu0 0
    %402 = vmatpush1.bf16.msra.mxu0 0
    %403 = vmatprep.subr.bf16.mxu0 0
    %404 = vmatpush1.bf16.msra.mxu0 0
    %405 = vmatprep.subr.bf16.mxu0 0
    %406 = vmatpush1.bf16.msra.mxu0 0
    %407 = vmatprep.subr.bf16.mxu0 0
    %408 = vmatpush1.bf16.msra.mxu0 0
    %409 = vmatprep.subr.bf16.mxu0 0
    %410 = vmatpush1.bf16.msra.mxu0 0
    %411 = vmatprep.subr.bf16.mxu0 0
    %412 = vmatpush1.bf16.msra.mxu0 %v393
    %413 = vmatprep.subr.bf16.mxu0 0
    %414 = vmatpush1.bf16.msra.mxu0 %v392
    %415 = vmatprep.subr.bf16.mxu0 0
    %416 = vmatpush2.bf16.msra.mxu0 0
    %417 = vmatprep.subr.bf16.mxu0 0
    %418 = vmatpush2.bf16.msra.mxu0 0
    %419 = vmatprep.subr.bf16.mxu0 0
    %420 = vmatpush2.bf16.msra.mxu0 0
    %421 = vmatprep.subr.bf16.mxu0 0
    %422 = vmatpush2.bf16.msra.mxu0 0
    %423 = vmatprep.subr.bf16.mxu0 0
    %424 = vmatpush2.bf16.msra.mxu0 0
    %425 = vmatprep.subr.bf16.mxu0 0
    %426 = vmatpush2.bf16.msra.mxu0 0
    %427 = vmatprep.subr.bf16.mxu0 0
    %428 = vmatpush2.bf16.msra.mxu0 0
    %429 = vmatprep.subr.bf16.mxu0 0
    %430 = vmatpush2.bf16.msra.mxu0 0
    %431 = vmatprep.mubr.bf16.mxu0 0
    %432 = vmatmul.mubr.bf16.gmra.mxu0 %v397
    %v433 = vpop.f32.mrf.mxu0
    %v434 = vadd.f32 %v379, %v433
    %v435 = vpop.f32.mrf.mxu0
    %v436 = vpop.f32.mrf.mxu0
    %v437 = vpop.f32.mrf.mxu0
    %438 = vdwg.mxu0
    %v440 = vlaneseq
    %v441 = vshrl.u32 %v440, 7
    %v442 = vsub.s32 0, %v441
    %v443 = vrot.slane %v83, %v442
    %v445 = vmul.f32 %v443, %v99
    %v447 = vlaneseq
    %v448 = vshrl.u32 %v447, 7
    %v449 = vsub.s32 0, %v448
    %v450 = vrot.slane %v84, %v449
    %453 = vrot.lane.b32.xlu0 %v98, 64
    %v454 = vpop.permute.xlu0 %453
    %v456 = vmul.f32 %v450, %v454
    %v457 = vadd.f32 %v445, %v456
    %v458 = vmul.f32 %v457, 1.8
    %v459 = vadd.f32 %v458, 0.01
    %v461 = vlaneseq
    %v462 = vshrl.u32 %v461, 7
    %v463 = vsub.s32 0, %v462
    %v464 = vrot.slane %v81, %v463
    %465 = vrot.lane.b32.xlu0 %v464, 64
    %v466 = vpop.permute.xlu0 %465
    %v468 = vmul.f32 %v97, %v466
    %v470 = vlaneseq
    %v471 = vshrl.u32 %v470, 7
    %v472 = vsub.s32 0, %v471
    %v473 = vrot.slane %v82, %v472
    %v475 = vmul.f32 %v473, %v434
    %477 = vrot.lane.b32.xlu0 %v475, 64
    %v478 = vpop.permute.xlu0 %477
    %v480 = vadd.f32 %v468, %v478
    %v481 = vmul.f32 %v459, %v454
    %483 = vrot.lane.b32.xlu0 %v481, 64
    %v484 = vpop.permute.xlu0 %483
    %v486 = vsub.f32 %v480, %v484
    %v487 = vsel %vm215, %v97, %v486
    %489 = vrot.lane.b32.xlu0 %v459, 64
    %v490 = vpop.permute.xlu0 %489
    %v492 = vsub.f32 %v487, %v490
    %vm493 = vcmp.gt.f32.partialorder %v492, 0.0
    %v494 = vsel %vm493, 1, 0
    %v495 = vcvt.s32.f32 %v494
    %v496 = vmul.f32 %v495, %v225
    %v497 = vadd.f32 %v102, %v496
    %v498 = vmul.f32 %v496, %v371
    %v499 = vadd.f32 %v103, %v498
    %s500 = sadd.s32 %s104, 1
    %s501 = smul.u32 %s500, 2
    %s502 = smul.addr %s501, 8
    %s503 = scalar_lea.vmem %s0, %s502
    %v504 = vld [vmem:[%s503] sm:$0xff]
    %v505 = vld [vmem:[%s503 + $0x8] sm:$0xff]
    %s506 = scalar_lea.vmem %s1, %s500
    %v507 = vld [vmem:[%s506] sm:$0x1]
    %509 = vrot.lane.b32.xlu0 %v504, 96
    %v510 = vpop.permute.xlu0 %509
    %v512 = vmul.f32 %v232, %v510
    %v513 = vpack.c.bf16 %v512, %v512
    %v515 = vsel %vm130, %v513, 0
    %517 = vmatprep.subr.bf16.mxu0 0
    %518 = vmatpush1.bf16.msra.mxu0 0
    %519 = vmatprep.subr.bf16.mxu0 0
    %520 = vmatpush1.bf16.msra.mxu0 0
    %521 = vmatprep.subr.bf16.mxu0 0
    %522 = vmatpush1.bf16.msra.mxu0 0
    %523 = vmatprep.subr.bf16.mxu0 0
    %524 = vmatpush1.bf16.msra.mxu0 0
    %525 = vmatprep.subr.bf16.mxu0 0
    %526 = vmatpush1.bf16.msra.mxu0 0
    %527 = vmatprep.subr.bf16.mxu0 0
    %528 = vmatpush1.bf16.msra.mxu0 0
    %529 = vmatprep.subr.bf16.mxu0 0
    %530 = vmatpush1.bf16.msra.mxu0 %v127
    %531 = vmatprep.subr.bf16.mxu0 0
    %532 = vmatpush1.bf16.msra.mxu0 %v126
    %533 = vmatprep.subr.bf16.mxu0 0
    %534 = vmatpush2.bf16.msra.mxu0 0
    %535 = vmatprep.subr.bf16.mxu0 0
    %536 = vmatpush2.bf16.msra.mxu0 0
    %537 = vmatprep.subr.bf16.mxu0 0
    %538 = vmatpush2.bf16.msra.mxu0 0
    %539 = vmatprep.subr.bf16.mxu0 0
    %540 = vmatpush2.bf16.msra.mxu0 0
    %541 = vmatprep.subr.bf16.mxu0 0
    %542 = vmatpush2.bf16.msra.mxu0 0
    %543 = vmatprep.subr.bf16.mxu0 0
    %544 = vmatpush2.bf16.msra.mxu0 0
    %545 = vmatprep.subr.bf16.mxu0 0
    %546 = vmatpush2.bf16.msra.mxu0 0
    %547 = vmatprep.subr.bf16.mxu0 0
    %548 = vmatpush2.bf16.msra.mxu0 0
    %549 = vmatprep.mubr.bf16.mxu0 0
    %550 = vmatmul.mubr.bf16.gmra.mxu0 %v515
    %v551 = vpop.f32.mrf.mxu0
    %v552 = vadd.f32 0.0, %v551
    %v553 = vpop.f32.mrf.mxu0
    %v554 = vpop.f32.mrf.mxu0
    %v555 = vpop.f32.mrf.mxu0
    %556 = vdwg.mxu0
    %v557 = vadd.f32 %v504, %v552
    %v558 = vmul.f32 %v179, %v189
    %v559 = vmul.f32 %v186, %v512
    %v560 = vadd.f32 %v558, %v559
    %v561 = vmul.f32 %v560, 1.8
    %v562 = vadd.f32 %v561, 0.01
    %v563 = vmul.f32 %v216, %v196
    %v564 = vmul.f32 %v203, %v557
    %v565 = vadd.f32 %v563, %v564
    %v566 = vmul.f32 %v562, %v512
    %v567 = vsub.f32 %v565, %v566
    %vm568 = vcmp.eq.f32.partialorder %v507, 0.0
    %v569 = vsel %vm568, 1, 0
    %v570 = vlaneseq
    %v571 = vshrl.u32 %v570, 7
    %v572 = vsub.s32 0, %v571
    %v573 = vrot.slane %v569, %v572
    %vm574 = vcmp.eq.s32.totalorder %v573, 1
    %v575 = vsel %vm574, %v216, %v567
    %v576 = vsub.f32 %v575, %v562
    %vm577 = vcmp.gt.f32.partialorder %v576, 0.0
    %v578 = vsel %vm577, 1, 0
    %v579 = vcvt.s32.f32 %v578
    %v581 = vlaneseq
    %v582 = vshrl.u32 %v581, 7
    %v583 = vsub.s32 0, %v582
    %v584 = vrot.slane %v507, %v583
    %v586 = vmul.f32 %v579, %v584
    %v587 = vadd.f32 %v228, %v586
    %588 = vrot.lane.b32.xlu0 %v504, 64
    %v589 = vpop.permute.xlu0 %588
    %v591 = vmul.f32 %v586, %v589
    %v592 = vmul.f32 %v373, %v589
    %v593 = vsel %vm130, %v591, %v592
    %v594 = vpack.c.bf16 %v593, %v593
    %v596 = vsel %vm266, %v594, 0
    %598 = vmatprep.subr.bf16.mxu0 0
    %599 = vmatpush1.bf16.msra.mxu0 0
    %600 = vmatprep.subr.bf16.mxu0 0
    %601 = vmatpush1.bf16.msra.mxu0 0
    %602 = vmatprep.subr.bf16.mxu0 0
    %603 = vmatpush1.bf16.msra.mxu0 0
    %604 = vmatprep.subr.bf16.mxu0 0
    %605 = vmatpush1.bf16.msra.mxu0 0
    %606 = vmatprep.subr.bf16.mxu0 0
    %607 = vmatpush1.bf16.msra.mxu0 %v261
    %608 = vmatprep.subr.bf16.mxu0 0
    %609 = vmatpush1.bf16.msra.mxu0 %v260
    %610 = vmatprep.subr.bf16.mxu0 0
    %611 = vmatpush1.bf16.msra.mxu0 %v259
    %612 = vmatprep.subr.bf16.mxu0 0
    %613 = vmatpush1.bf16.msra.mxu0 %v258
    %614 = vmatprep.subr.bf16.mxu0 0
    %615 = vmatpush2.bf16.msra.mxu0 0
    %616 = vmatprep.subr.bf16.mxu0 0
    %617 = vmatpush2.bf16.msra.mxu0 0
    %618 = vmatprep.subr.bf16.mxu0 0
    %619 = vmatpush2.bf16.msra.mxu0 0
    %620 = vmatprep.subr.bf16.mxu0 0
    %621 = vmatpush2.bf16.msra.mxu0 0
    %622 = vmatprep.subr.bf16.mxu0 0
    %623 = vmatpush2.bf16.msra.mxu0 0
    %624 = vmatprep.subr.bf16.mxu0 0
    %625 = vmatpush2.bf16.msra.mxu0 0
    %626 = vmatprep.subr.bf16.mxu0 0
    %627 = vmatpush2.bf16.msra.mxu0 0
    %628 = vmatprep.subr.bf16.mxu0 0
    %629 = vmatpush2.bf16.msra.mxu0 0
    %630 = vmatprep.mubr.bf16.mxu0 0
    %631 = vmatmul.mubr.bf16.gmra.mxu0 %v596
    %v632 = vpop.f32.mrf.mxu0
    %v633 = vadd.f32 %v240, %v632
    %v634 = vpop.f32.mrf.mxu0
    %v635 = vpop.f32.mrf.mxu0
    %v636 = vpop.f32.mrf.mxu0
    %637 = vdwg.mxu0
    %v638 = vmul.f32 %v314, %v328
    %640 = vrot.lane.b32.xlu0 %v592, 96
    %v641 = vpop.permute.xlu0 %640
    %v643 = vmul.f32 %v321, %v641
    %v644 = vadd.f32 %v638, %v643
    %v645 = vmul.f32 %v644, 1.8
    %v646 = vadd.f32 %v645, 0.01
    %v647 = vmul.f32 %v358, %v337
    %v648 = vmul.f32 %v344, %v633
    %650 = vrot.lane.b32.xlu0 %v648, 32
    %v651 = vpop.permute.xlu0 %650
    %v653 = vadd.f32 %v647, %v651
    %v654 = vmul.f32 %v646, %v641
    %656 = vrot.lane.b32.xlu0 %v654, 32
    %v657 = vpop.permute.xlu0 %656
    %v659 = vsub.f32 %v653, %v657
    %v660 = vsel %vm574, %v358, %v659
    %662 = vrot.lane.b32.xlu0 %v646, 32
    %v663 = vpop.permute.xlu0 %662
    %v665 = vsub.f32 %v660, %v663
    %vm666 = vcmp.gt.f32.partialorder %v665, 0.0
    %v667 = vsel %vm666, 1, 0
    %v668 = vcvt.s32.f32 %v667
    %v669 = vmul.f32 %v668, %v584
    %v670 = vadd.f32 %v368, %v669
    %672 = vrot.lane.b32.xlu0 %v505, 32
    %v673 = vpop.permute.xlu0 %672
    %v675 = vmul.f32 %v669, %v673
    %v676 = vpack.c.bf16 %v675, %v675
    %678 = vrot.lane.b32.xlu0 %v676, 96
    %v679 = vpop.permute.xlu0 %678
    %v681 = vsel %vm130, %v679, 0
    %683 = vmatprep.subr.bf16.mxu0 0
    %684 = vmatpush1.bf16.msra.mxu0 0
    %685 = vmatprep.subr.bf16.mxu0 0
    %686 = vmatpush1.bf16.msra.mxu0 0
    %687 = vmatprep.subr.bf16.mxu0 0
    %688 = vmatpush1.bf16.msra.mxu0 0
    %689 = vmatprep.subr.bf16.mxu0 0
    %690 = vmatpush1.bf16.msra.mxu0 0
    %691 = vmatprep.subr.bf16.mxu0 0
    %692 = vmatpush1.bf16.msra.mxu0 0
    %693 = vmatprep.subr.bf16.mxu0 0
    %694 = vmatpush1.bf16.msra.mxu0 0
    %695 = vmatprep.subr.bf16.mxu0 0
    %696 = vmatpush1.bf16.msra.mxu0 %v393
    %697 = vmatprep.subr.bf16.mxu0 0
    %698 = vmatpush1.bf16.msra.mxu0 %v392
    %699 = vmatprep.subr.bf16.mxu0 0
    %700 = vmatpush2.bf16.msra.mxu0 0
    %701 = vmatprep.subr.bf16.mxu0 0
    %702 = vmatpush2.bf16.msra.mxu0 0
    %703 = vmatprep.subr.bf16.mxu0 0
    %704 = vmatpush2.bf16.msra.mxu0 0
    %705 = vmatprep.subr.bf16.mxu0 0
    %706 = vmatpush2.bf16.msra.mxu0 0
    %707 = vmatprep.subr.bf16.mxu0 0
    %708 = vmatpush2.bf16.msra.mxu0 0
    %709 = vmatprep.subr.bf16.mxu0 0
    %710 = vmatpush2.bf16.msra.mxu0 0
    %711 = vmatprep.subr.bf16.mxu0 0
    %712 = vmatpush2.bf16.msra.mxu0 0
    %713 = vmatprep.subr.bf16.mxu0 0
    %714 = vmatpush2.bf16.msra.mxu0 0
    %715 = vmatprep.mubr.bf16.mxu0 0
    %716 = vmatmul.mubr.bf16.gmra.mxu0 %v681
    %v717 = vpop.f32.mrf.mxu0
    %v718 = vadd.f32 %v379, %v717
    %v719 = vpop.f32.mrf.mxu0
    %v720 = vpop.f32.mrf.mxu0
    %v721 = vpop.f32.mrf.mxu0
    %722 = vdwg.mxu0
    %v723 = vmul.f32 %v443, %v457
    %725 = vrot.lane.b32.xlu0 %v498, 64
    %v726 = vpop.permute.xlu0 %725
    %v728 = vmul.f32 %v450, %v726
    %v729 = vadd.f32 %v723, %v728
    %v730 = vmul.f32 %v729, 1.8
    %v731 = vadd.f32 %v730, 0.01
    %v732 = vmul.f32 %v487, %v466
    %v733 = vmul.f32 %v473, %v718
    %735 = vrot.lane.b32.xlu0 %v733, 64
    %v736 = vpop.permute.xlu0 %735
    %v738 = vadd.f32 %v732, %v736
    %v739 = vmul.f32 %v731, %v726
    %741 = vrot.lane.b32.xlu0 %v739, 64
    %v742 = vpop.permute.xlu0 %741
    %v744 = vsub.f32 %v738, %v742
    %v745 = vsel %vm574, %v487, %v744
    %747 = vrot.lane.b32.xlu0 %v731, 64
    %v748 = vpop.permute.xlu0 %747
    %v750 = vsub.f32 %v745, %v748
    %vm751 = vcmp.gt.f32.partialorder %v750, 0.0
    %v752 = vsel %vm751, 1, 0
    %v753 = vcvt.s32.f32 %v752
    %v754 = vmul.f32 %v753, %v584
    %v755 = vadd.f32 %v497, %v754
    %v756 = vmul.f32 %v754, %v673
    %v757 = vadd.f32 %v499, %v756
  $region66: #{rhy_asrnn_forward.3} parent=0 // loop_footer
    %s90 = sadd.s32 1, %s86
  $region67: #{rhy_asrnn_forward.3} parent=0 // loop_footer_branch
    %85 = sbr.rel target = $region63
  $region68: #{rhy_asrnn_forward.3} parent=0 // loop_exit
    _
  %v758 = vld [vmem:[%s5] sm:$0xff]
  %v759 = vld [vmem:[%s5 + $0x8] sm:$0xff]
  %v760 = vld [vmem:[%s5 + $0x10] sm:$0xff]
  %v761 = vld [vmem:[%s5 + $0x18] sm:$0xff]
  %v762 = vld [vmem:[%s8] sm:$0x1]
  %v763 = vmul.f32 %v762, 98.0
  %v765 = vlaneseq
  %v766 = vshrl.u32 %v765, 7
  %v767 = vsub.s32 0, %v766
  %v768 = vrot.slane %v763, %v767
  %771 = vrot.lane.b32.xlu0 %v103, 64
  %v772 = vpop.permute.xlu0 %771
  %vm773 = vcmask 261120
  %v774 = vsel %vm773, %v772, 0
  %776 = vmatprep.subr.mxu0 0.0
  %777 = vmatpush1.msra.mxu0 0.0
  %778 = vmatprep.subr.mxu0 0.0
  %779 = vmatpush1.msra.mxu0 0.0
  %780 = vmatprep.subr.mxu0 0.0
  %781 = vmatpush1.msra.mxu0 0.0
  %782 = vmatprep.subr.mxu0 0.0
  %783 = vmatpush1.msra.mxu0 0.0
  %784 = vmatprep.subr.mxu0 0.0
  %785 = vmatpush1.msra.mxu0 0.0
  %786 = vmatprep.subr.mxu0 0.0
  %787 = vmatpush1.msra.mxu0 0.0
  %788 = vmatprep.subr.mxu0 0.0
  %789 = vmatpush1.msra.mxu0 0.0
  %790 = vmatprep.subr.mxu0 0.0
  %791 = vmatpush1.msra.mxu0 0.0
  %792 = vmatprep.subr.mxu0 0.0
  %793 = vmatpush1.msra.mxu0 0.0
  %794 = vmatprep.subr.mxu0 0.0
  %795 = vmatpush1.msra.mxu0 0.0
  %796 = vmatprep.subr.mxu0 0.0
  %797 = vmatpush1.msra.mxu0 0.0
  %798 = vmatprep.subr.mxu0 0.0
  %799 = vmatpush1.msra.mxu0 0.0
  %800 = vmatprep.subr.mxu0 0.0
  %801 = vmatpush1.msra.mxu0 %v761
  %802 = vmatprep.subr.mxu0 0.0
  %803 = vmatpush1.msra.mxu0 %v760
  %804 = vmatprep.subr.mxu0 0.0
  %805 = vmatpush1.msra.mxu0 %v759
  %806 = vmatprep.subr.mxu0 0.0
  %807 = vmatpush1.msra.mxu0 %v758
  %808 = vmatprep.subr.mxu0 0.0
  %809 = vmatpush2.msra.mxu0 0.0
  %810 = vmatprep.subr.mxu0 0.0
  %811 = vmatpush2.msra.mxu0 0.0
  %812 = vmatprep.subr.mxu0 0.0
  %813 = vmatpush2.msra.mxu0 0.0
  %814 = vmatprep.subr.mxu0 0.0
  %815 = vmatpush2.msra.mxu0 0.0
  %816 = vmatprep.subr.mxu0 0.0
  %817 = vmatpush2.msra.mxu0 0.0
  %818 = vmatprep.subr.mxu0 0.0
  %819 = vmatpush2.msra.mxu0 0.0
  %820 = vmatprep.subr.mxu0 0.0
  %821 = vmatpush2.msra.mxu0 0.0
  %822 = vmatprep.subr.mxu0 0.0
  %823 = vmatpush2.msra.mxu0 0.0
  %824 = vmatprep.subr.mxu0 0.0
  %825 = vmatpush2.msra.mxu0 0.0
  %826 = vmatprep.subr.mxu0 0.0
  %827 = vmatpush2.msra.mxu0 0.0
  %828 = vmatprep.subr.mxu0 0.0
  %829 = vmatpush2.msra.mxu0 0.0
  %830 = vmatprep.subr.mxu0 0.0
  %831 = vmatpush2.msra.mxu0 0.0
  %832 = vmatprep.subr.mxu0 0.0
  %833 = vmatpush2.msra.mxu0 0.0
  %834 = vmatprep.subr.mxu0 0.0
  %835 = vmatpush2.msra.mxu0 0.0
  %836 = vmatprep.subr.mxu0 0.0
  %837 = vmatpush2.msra.mxu0 0.0
  %838 = vmatprep.subr.mxu0 0.0
  %839 = vmatpush2.msra.mxu0 0.0
  %840 = vmatprep.mubr.f32.mxu0 0.0
  %841 = vmatmul.mubr.f32.gmra.mxu0 %v774
  %v842 = vpop.f32.mrf.mxu0
  %v843 = vadd.f32 %v768, %v842
  %v844 = vpop.f32.mrf.mxu0
  %845 = vdwg.mxu0
  %vm846 = vcmask 80896
  %847 = vst.msk [vmem:[%s15] sm:$0xff] %vm846, %v843
  %848 = vst.msk [vmem:[%s16] sm:$0xff] %vm773, %v100
  %850 = vrot.lane.b32.xlu0 %v101, 96
  %v851 = vpop.permute.xlu0 %850
  %853 = vst.msk [vmem:[%s17] sm:$0xff] %vm773, %v851
  %855 = vrot.lane.b32.xlu0 %v102, 64
  %v856 = vpop.permute.xlu0 %855
  %858 = vst.msk [vmem:[%s18] sm:$0xff] %vm773, %v856
  // Predicated region
  $region69: #{rhy_asrnn_forward.3} parent=0 // pred_check
    _
  $region70: #{rhy_asrnn_forward.3} parent=0 // pred_check_branch
    %860 = sbr.rel (0) target = $region72
  $region71: #{rhy_asrnn_forward.3} parent=0 // pred_region
    _
  $region72: #{rhy_asrnn_forward.3} parent=0 // pred_fallthru
    _
  // Predicated region
  $region73: #{rhy_asrnn_forward.3} parent=0 // pred_check
    _
  $region74: #{rhy_asrnn_forward.3} parent=0 // pred_check_branch
    %862 = sbr.rel (0) target = $region76
  $region75: #{rhy_asrnn_forward.3} parent=0 // pred_region
    _
  $region76: #{rhy_asrnn_forward.3} parent=0 // pred_fallthru
    _
  // Predicated region
  $region77: #{rhy_asrnn_forward.3} parent=0 // pred_check
    _
  $region78: #{rhy_asrnn_forward.3} parent=0 // pred_check_branch
    %864 = sbr.rel (0) target = $region80
  $region79: #{rhy_asrnn_forward.3} parent=0 // pred_region
    _
  $region80: #{rhy_asrnn_forward.3} parent=0 // pred_fallthru
    _
  // Predicated region
  $region81: #{rhy_asrnn_forward.3} parent=0 // pred_check
    _
  $region82: #{rhy_asrnn_forward.3} parent=0 // pred_check_branch
    %866 = sbr.rel (0) target = $region84
  $region83: #{rhy_asrnn_forward.3} parent=0 // pred_region
    _
  $region84: #{rhy_asrnn_forward.3} parent=0 // pred_fallthru
    _
  // Predicated region
  $region85: #{rhy_asrnn_forward.3} parent=0 // pred_check
    _
  $region86: #{rhy_asrnn_forward.3} parent=0 // pred_check_branch
    %868 = sbr.rel (0) target = $region88
  $region87: #{rhy_asrnn_forward.3} parent=0 // pred_region
    _
  $region88: #{rhy_asrnn_forward.3} parent=0 // pred_fallthru
    _
  // Predicated region
  $region89: #{rhy_asrnn_forward.3} parent=0 // pred_check
    _
  $region90: #{rhy_asrnn_forward.3} parent=0 // pred_check_branch
    %870 = sbr.rel (0) target = $region92
  $region91: #{rhy_asrnn_forward.3} parent=0 // pred_region
    _
  $region92: #{rhy_asrnn_forward.3} parent=0 // pred_fallthru
    _
  // Predicated region
  $region93: #{rhy_asrnn_forward.3} parent=0 // pred_check
    _
  $region94: #{rhy_asrnn_forward.3} parent=0 // pred_check_branch
    %872 = sbr.rel (0) target = $region96
  $region95: #{rhy_asrnn_forward.3} parent=0 // pred_region
    _
  $region96: #{rhy_asrnn_forward.3} parent=0 // pred_fallthru
    _
  // Predicated region
  $region97: #{rhy_asrnn_forward.3} parent=0 // pred_check
    _
  $region98: #{rhy_asrnn_forward.3} parent=0 // pred_check_branch
    %874 = sbr.rel (0) target = $region100
  $region99: #{rhy_asrnn_forward.3} parent=0 // pred_region
    _
  $region100: #{rhy_asrnn_forward.3} parent=0 // pred_fallthru
    _

</llo_original>
